<compile_context>
chip_gen: v5e
topology: v5e:2x2
jax: 0.10.0
libtpu: 0.0.40
codegen_flags: <defaults>
</compile_context>

<pallas_src>
import jax
import jax.numpy as jnp
from jax import lax
from jax.experimental import pallas as pl
from jax.experimental.pallas import tpu as pltpu

SELU_ALPHA = 1.6732632423543772
SELU_SCALE = 1.0507009873554805
BN_EPS = 1e-5
LEAKY_SLOPE = 0.01


def selu(x):
    return SELU_SCALE * jnp.where(x > 0, x, SELU_ALPHA * (jnp.exp(x) - 1.0))


def leaky_relu(x):
    return jnp.where(x >= 0, x, LEAKY_SLOPE * x)


# ---------------------------------------------------------------------------
# Host-side weight transform: fold the kx taps and the horizontal 'same' zero
# padding of a (k, k, Cin, Cout) HWIO kernel into a stacked lane->lane block
# matrix of shape (k*W*Cin, W*Cout); the conv becomes k accumulating matmuls
# against row-slices of this matrix, with lane order [w, ci] on the input side.
# ---------------------------------------------------------------------------
def conv_to_lane_blocks(w_hwio, Wsp):
    k, _, Cin, Cout = w_hwio.shape
    p = (k - 1) // 2
    w_idx = jnp.arange(Wsp)
    diff = w_idx[:, None] - w_idx[None, :] + p          # kx tap linking w_in -> w_out
    valid = ((diff >= 0) & (diff < k)).astype(w_hwio.dtype)
    kx = jnp.clip(diff, 0, k - 1)
    blocks = w_hwio[:, kx, :, :]                        # (k, W_in, W_out, Cin, Cout)
    blocks = blocks * valid[None, :, :, None, None]
    blocks = jnp.transpose(blocks, (0, 1, 3, 2, 4))     # (k, W_in, Cin, W_out, Cout)
    return blocks.reshape(k * Wsp * Cin, Wsp * Cout)


def lane_fold_matrices(Wsp, C):
    # fold (W*C, C): sums a lane-dense (.., W*C) row over w into (.., C).
    # bcast = fold.T (C, W*C): replicates a (.., C) row across w.
    eye = jnp.eye(C, dtype=jnp.float32)
    fold = jnp.tile(eye, (Wsp, 1))
    return fold, fold.T


# ---------------------------------------------------------------------------
# Fused DownLayer kernel
# ---------------------------------------------------------------------------
def make_down_layer_kernel(N, H, W, Cin, Cout, k, pool, matmul_dtype):
    rows = N * H
    p = (k - 1) // 2

    def make_stage(masks):
        def stage(t, gamma, beta, w_ref, bias_lane, fold, bcast, C_in, act, residual):
            # t: (N*H, W*C_in) f32 slab, lane index = w*C_in + ci.
            WCi = W * C_in
            inv_cnt = 1.0 / float(N * H * W)

            # --- BatchNorm2d (training-mode batch stats), two-pass variance ---
            s1 = jnp.sum(t, axis=0, keepdims=True)                                   # (1, W*C_in)
            mean = jnp.dot(s1, fold, preferred_element_type=jnp.float32) * inv_cnt   # (1, C_in)
            mean_l = jnp.dot(mean, bcast, preferred_element_type=jnp.float32)        # (1, W*C_in)
            d = t - mean_l
            s2 = jnp.sum(d * d, axis=0, keepdims=True)
            var = jnp.dot(s2, fold, preferred_element_type=jnp.float32) * inv_cnt    # (1, C_in)
            scale = gamma * lax.rsqrt(var + BN_EPS)
            sb = jnp.concatenate([scale, beta], axis=0)                              # (2, C_in)
            sb_l = jnp.dot(sb, bcast, preferred_element_type=jnp.float32)            # (2, W*C_in)
            a = act(d * sb_l[0:1, :] + sb_l[1:2, :])                                 # FMA + activation

            # --- Conv2d 'same': k accumulating MXU dots; vertical taps via
            #     sublane roll + image-boundary mask (no im2col concat buffer) ---
            out = None
            for ky in range(k):
                dy = ky - p
                if dy == 0:
                    tap = a
                else:
                    rolled = pltpu.roll(a, shift=(-dy) % rows, axis=0)
                    tap = jnp.where(masks[dy], rolled, 0.0)
                w_blk = w_ref[ky * WCi:(ky + 1) * WCi, :]          # static Ref view slice
                part = jnp.dot(tap.astype(matmul_dtype), w_blk,
                               preferred_element_type=jnp.float32)  # (N*H, W*Cout)
                out = part if out is None else out + part
            out = out + bias_lane
            if residual:
                out = out + t                                       # skip = pre-BN input
            return out

        return stage

    def kernel(x_ref,
               fi_ref, bi_ref, fo_ref, bo_ref,
               g0_ref, b0_ref, w0_ref, c0_ref,
               g1_ref, b1_ref, w1_ref, c1_ref,
               g2_ref, b2_ref, w2_ref, c2_ref,
               out_ref):
        # Per-row vertical-padding masks, built once and shared by all stages.
        h = lax.broadcasted_iota(jnp.int32, (rows, 1), 0) % H
        masks = {dy: (h + dy >= 0) & (h + dy < H)
                 for dy in range(-p, p + 1) if dy != 0}
        stage = make_stage(masks)

        fi, bi = fi_ref[...], bi_ref[...]
        fo, bo = fo_ref[...], bo_ref[...]

        t = x_ref[...].astype(jnp.float32)                  # (N*H, W*Cin)
        # nn.Sequential: BN(in) -> SELU -> Conv(in->out)
        t = stage(t, g0_ref[...], b0_ref[...], w0_ref, c0_ref[...],
                  fi, bi, Cin, selu, residual=False)
        # ResidualConv x2: BN -> LeakyReLU -> Conv(out->out) + skip
        t = stage(t, g1_ref[...], b1_ref[...], w1_ref, c1_ref[...],
                  fo, bo, Cout, leaky_relu, residual=True)
        t = stage(t, g2_ref[...], b2_ref[...], w2_ref, c2_ref[...],
                  fo, bo, Cout, leaky_relu, residual=True)

        if pool:
            # MaxPool2d(2,2) epilogue: W-pair max via a lane roll, H-pair max via
            # a sublane-pair reduce; the even-w lane selection is finished by an
            # exact XLA slice in the wrapper so this store stays 128-lane dense.
            # (For W*Cout >= 256, compact in-kernel instead to halve HBM writes.)
            WCo = W * Cout
            z = jnp.maximum(t, pltpu.roll(t, shift=WCo - Cout, axis=1))
            z = z.reshape(rows // 2, 2, WCo)
            out_ref[...] = jnp.max(z, axis=1).astype(out_ref.dtype)
        else:
            out_ref[...] = t.astype(out_ref.dtype)

    return kernel


# ---------------------------------------------------------------------------
# DownLayer forward (single fused pallas_call) and parameter init
# ---------------------------------------------------------------------------
# TODO(synk): BatchNorm2d running_mean/running_var buffer updates (a training-time
# side effect) are not produced; only the forward tensor is computed.
def down_layer_forward(x_nchw, params, pool=True, matmul_dtype=jnp.bfloat16):
    N, Cin, H, W = x_nchw.shape
    k = params["conv0_w"].shape[0]
    Cout = params["conv0_w"].shape[-1]
    if pool:
        assert H % 2 == 0 and W % 2 == 0, "MaxPool2d(2,2) requires even H and W"

    # NCHW (PyTorch) -> lane-dense 2D slab (N*H, W*Cin): W*C sits on the lane axis.
    x_slab = jnp.transpose(x_nchw, (0, 2, 3, 1)).astype(jnp.float32)
    x_slab = x_slab.reshape(N * H, W * Cin)

    def stage_args(g, b, w, bias, ci):
        return (
            g.reshape(1, ci).astype(jnp.float32),
            b.reshape(1, ci).astype(jnp.float32),
            # Cast the stacked conv block weights to the matmul dtype on the host
            # (bf16 by default) so no in-kernel weight cast is needed.
            conv_to_lane_blocks(w.astype(jnp.float32), W).astype(matmul_dtype),
            jnp.tile(bias.astype(jnp.float32), W).reshape(1, W * Cout),
        )

    fold_in, bcast_in = lane_fold_matrices(W, Cin)
    fold_out, bcast_out = lane_fold_matrices(W, Cout)

    args = (
        x_slab,
        fold_in, bcast_in, fold_out, bcast_out,
        *stage_args(params["bn0_g"], params["bn0_b"],
                    params["conv0_w"], params["conv0_b"], Cin),
        *stage_args(params["bn1_g"], params["bn1_b"],
                    params["conv1_w"], params["conv1_b"], Cout),
        *stage_args(params["bn2_g"], params["bn2_b"],
                    params["conv2_w"], params["conv2_b"], Cout),
    )

    out_rows = N * (H // 2) if pool else N * H
    vmem = pl.BlockSpec(memory_space=pltpu.MemorySpace.VMEM)

    out_slab = pl.pallas_call(
        make_down_layer_kernel(N, H, W, Cin, Cout, k, pool, matmul_dtype),
        out_shape=jax.ShapeDtypeStruct((out_rows, W * Cout), jnp.float32),
        in_specs=[vmem] * len(args),
        out_specs=vmem,
        compiler_params=pltpu.CompilerParams(vmem_limit_bytes=32 * 1024 * 1024),
    )(*args)

    if pool:
        # Finish the pool: keep even-w columns (tiny exact slice in XLA).
        out = out_slab.reshape(N, H // 2, W, Cout)[:, :, ::2, :]
    else:
        out = out_slab.reshape(N, H, W, Cout)
    return jnp.transpose(out, (0, 3, 1, 2))


def init_params(key, in_channels, out_channels, kernel_size):
    def conv_init(kk, cin, cout, ksize):
        kw, kb = jax.random.split(kk)
        fan_in = cin * ksize * ksize
        bound = 1.0 / jnp.sqrt(float(fan_in))
        w = jax.random.uniform(kw, (ksize, ksize, cin, cout), jnp.float32, -bound, bound)
        b = jax.random.uniform(kb, (cout,), jnp.float32, -bound, bound)
        return w, b

    k0, k1, k2 = jax.random.split(key, 3)
    params = {
        "bn0_g": jnp.ones((in_channels,), jnp.float32),
        "bn0_b": jnp.zeros((in_channels,), jnp.float32),
        "bn1_g": jnp.ones((out_channels,), jnp.float32),
        "bn1_b": jnp.zeros((out_channels,), jnp.float32),
        "bn2_g": jnp.ones((out_channels,), jnp.float32),
        "bn2_b": jnp.zeros((out_channels,), jnp.float32),
    }
    params["conv0_w"], params["conv0_b"] = conv_init(k0, in_channels, out_channels, kernel_size)
    params["conv1_w"], params["conv1_b"] = conv_init(k1, out_channels, out_channels, kernel_size)
    params["conv2_w"], params["conv2_b"] = conv_init(k2, out_channels, out_channels, kernel_size)
    return params


# ---------------------------------------------------------------------------
# Pure-JAX reference (same math, f32) for the correctness check
# ---------------------------------------------------------------------------
def _ref_block(x, gamma, beta, w_hwio, b, act_fn, residual):
    mean = jnp.mean(x, axis=(0, 1, 2), keepdims=True)
    var = jnp.mean((x - mean) ** 2, axis=(0, 1, 2), keepdims=True)
    a = act_fn((x - mean) / jnp.sqrt(var + BN_EPS) * gamma + beta)
    y = lax.conv_general_dilated(
        a, w_hwio, (1, 1), "SAME",
        dimension_numbers=("NHWC", "HWIO", "NHWC")) + b
    return y + x if residual else y


def ref_down_layer(x_nchw, params, pool=True):
    x = jnp.transpose(x_nchw, (0, 2, 3, 1)).astype(jnp.float32)
    x = _ref_block(x, params["bn0_g"], params["bn0_b"],
                   params["conv0_w"], params["conv0_b"], selu, False)
    x = _ref_block(x, params["bn1_g"], params["bn1_b"],
                   params["conv1_w"], params["conv1_b"], leaky_relu, True)
    x = _ref_block(x, params["bn2_g"], params["bn2_b"],
                   params["conv2_w"], params["conv2_b"], leaky_relu, True)
    if pool:
        N, H, W, C = x.shape
        x = jnp.max(x.reshape(N, H // 2, 2, W // 2, 2, C), axis=(2, 4))
    return jnp.transpose(x, (0, 3, 1, 2))


if __name__ == "__main__":
    in_channels, out_channels, kernel_size, pool = 4, 8, 3, True
    N, Hsp, Wsp = 2, 16, 16

    root = jax.random.PRNGKey(0)
    kx, kp = jax.random.split(root)
    x = jax.random.normal(kx, (N, in_channels, Hsp, Wsp), jnp.float32)
    params = init_params(kp, in_channels, out_channels, kernel_size)

    fwd = jax.jit(down_layer_forward, static_argnames=("pool", "matmul_dtype"))
    ref = ref_down_layer(x, params, pool=pool)

    # 1) f32 matmul path: bit-parity structural check against the f32 reference.
    out_f32 = jax.block_until_ready(fwd(x, params, pool=pool, matmul_dtype=jnp.float32))
    assert out_f32.shape == (N, out_channels, Hsp // 2, Wsp // 2), out_f32.shape
    assert jnp.allclose(out_f32, ref, atol=1e-3, rtol=1e-3), (
        float(jnp.max(jnp.abs(out_f32 - ref))))

    # 2) bf16 MXU-operand path (production setting): looser tolerance accounts
    #    only for bf16 quantization of conv weights/activations (accumulation
    #    is still f32); values are O(1) so 5e-2 still catches structural bugs.
    out_bf16 = jax.block_until_ready(fwd(x, params, pool=pool, matmul_dtype=jnp.bfloat16))
    assert out_bf16.shape == (N, out_channels, Hsp // 2, Wsp // 2), out_bf16.shape
    assert jnp.allclose(out_bf16, ref, atol=5e-2, rtol=5e-2), (
        float(jnp.max(jnp.abs(out_bf16 - ref))))

    print("KERNEL_OK")
</pallas_src>

<mosaic_0001>
module attributes {stable_mosaic.version = 11 : i64} {
  func.func @kernel(%arg0: memref<32x64xf32, #tpu.memory_space<vmem>>, %arg1: memref<64x4xf32, #tpu.memory_space<vmem>>, %arg2: memref<4x64xf32, #tpu.memory_space<vmem>>, %arg3: memref<128x8xf32, #tpu.memory_space<vmem>>, %arg4: memref<8x128xf32, #tpu.memory_space<vmem>>, %arg5: memref<1x4xf32, #tpu.memory_space<vmem>>, %arg6: memref<1x4xf32, #tpu.memory_space<vmem>>, %arg7: memref<192x128xf32, #tpu.memory_space<vmem>>, %arg8: memref<1x128xf32, #tpu.memory_space<vmem>>, %arg9: memref<1x8xf32, #tpu.memory_space<vmem>>, %arg10: memref<1x8xf32, #tpu.memory_space<vmem>>, %arg11: memref<384x128xf32, #tpu.memory_space<vmem>>, %arg12: memref<1x128xf32, #tpu.memory_space<vmem>>, %arg13: memref<1x8xf32, #tpu.memory_space<vmem>>, %arg14: memref<1x8xf32, #tpu.memory_space<vmem>>, %arg15: memref<384x128xf32, #tpu.memory_space<vmem>>, %arg16: memref<1x128xf32, #tpu.memory_space<vmem>>, %arg17: memref<16x128xf32, #tpu.memory_space<vmem>>) attributes {dimension_semantics = [], scalar_prefetch = 0 : i64, scratch_operands = 0 : i64, tpu.core_type = #tpu.core_type<tc>} {
    %0 = tpu.iota {dimensions = array<i32: 0>} : vector<32x1xi32>
    %c16_i32 = arith.constant 16 : i32
    %c0_i32 = arith.constant 0 : i32
    %1 = arith.cmpi eq, %c16_i32, %c0_i32 : i32
    %c1_i32 = arith.constant 1 : i32
    %2 = arith.select %1, %c1_i32, %c16_i32 : i32
    %3 = vector.broadcast %2 : i32 to vector<32x1xi32>
    %4 = arith.remsi %0, %3 : vector<32x1xi32>
    %c0_i32_0 = arith.constant 0 : i32
    %5 = vector.broadcast %c0_i32_0 : i32 to vector<32x1xi32>
    %6 = arith.cmpi ne, %4, %5 : vector<32x1xi32>
    %c0_i32_1 = arith.constant 0 : i32
    %7 = vector.broadcast %c0_i32_1 : i32 to vector<32x1xi32>
    %8 = arith.cmpi slt, %4, %7 : vector<32x1xi32>
    %c0_i32_2 = arith.constant 0 : i32
    %9 = arith.cmpi slt, %2, %c0_i32_2 : i32
    %10 = vector.broadcast %9 : i1 to vector<32x1xi1>
    %11 = vector.broadcast %10 : vector<32x1xi1> to vector<32x1xi1>
    %12 = arith.xori %8, %11 : vector<32x1xi1>
    %13 = arith.andi %12, %6 : vector<32x1xi1>
    %14 = vector.broadcast %2 : i32 to vector<32x1xi32>
    %15 = arith.addi %4, %14 : vector<32x1xi32>
    %16 = arith.select %13, %15, %4 : vector<32x1xi1>, vector<32x1xi32>
    %c-1_i32 = arith.constant -1 : i32
    %17 = vector.broadcast %c-1_i32 : i32 to vector<32x1xi32>
    %18 = arith.addi %16, %17 : vector<32x1xi32>
    %c0_i32_3 = arith.constant 0 : i32
    %19 = vector.broadcast %c0_i32_3 : i32 to vector<32x1xi32>
    %20 = arith.cmpi sge, %18, %19 : vector<32x1xi32>
    %c-1_i32_4 = arith.constant -1 : i32
    %21 = vector.broadcast %c-1_i32_4 : i32 to vector<32x1xi32>
    %22 = arith.addi %16, %21 : vector<32x1xi32>
    %c16_i32_5 = arith.constant 16 : i32
    %23 = vector.broadcast %c16_i32_5 : i32 to vector<32x1xi32>
    %24 = arith.cmpi slt, %22, %23 : vector<32x1xi32>
    %25 = arith.andi %20, %24 : vector<32x1xi1>
    %c1_i32_6 = arith.constant 1 : i32
    %26 = vector.broadcast %c1_i32_6 : i32 to vector<32x1xi32>
    %27 = arith.addi %16, %26 : vector<32x1xi32>
    %c0_i32_7 = arith.constant 0 : i32
    %28 = vector.broadcast %c0_i32_7 : i32 to vector<32x1xi32>
    %29 = arith.cmpi sge, %27, %28 : vector<32x1xi32>
    %c1_i32_8 = arith.constant 1 : i32
    %30 = vector.broadcast %c1_i32_8 : i32 to vector<32x1xi32>
    %31 = arith.addi %16, %30 : vector<32x1xi32>
    %c16_i32_9 = arith.constant 16 : i32
    %32 = vector.broadcast %c16_i32_9 : i32 to vector<32x1xi32>
    %33 = arith.cmpi slt, %31, %32 : vector<32x1xi32>
    %34 = arith.andi %29, %33 : vector<32x1xi1>
    %c0 = arith.constant 0 : index
    %c0_10 = arith.constant 0 : index
    %35 = vector.load %arg1[%c0, %c0_10] : memref<64x4xf32, #tpu.memory_space<vmem>>, vector<64x4xf32>
    %c0_11 = arith.constant 0 : index
    %c0_12 = arith.constant 0 : index
    %36 = vector.load %arg2[%c0_11, %c0_12] : memref<4x64xf32, #tpu.memory_space<vmem>>, vector<4x64xf32>
    %c0_13 = arith.constant 0 : index
    %c0_14 = arith.constant 0 : index
    %37 = vector.load %arg3[%c0_13, %c0_14] : memref<128x8xf32, #tpu.memory_space<vmem>>, vector<128x8xf32>
    %c0_15 = arith.constant 0 : index
    %c0_16 = arith.constant 0 : index
    %38 = vector.load %arg4[%c0_15, %c0_16] : memref<8x128xf32, #tpu.memory_space<vmem>>, vector<8x128xf32>
    %c0_17 = arith.constant 0 : index
    %c0_18 = arith.constant 0 : index
    %39 = vector.load %arg0[%c0_17, %c0_18] : memref<32x64xf32, #tpu.memory_space<vmem>>, vector<32x64xf32>
    %c0_19 = arith.constant 0 : index
    %c0_20 = arith.constant 0 : index
    %40 = vector.load %arg5[%c0_19, %c0_20] : memref<1x4xf32, #tpu.memory_space<vmem>>, vector<1x4xf32>
    %c0_21 = arith.constant 0 : index
    %c0_22 = arith.constant 0 : index
    %41 = vector.load %arg6[%c0_21, %c0_22] : memref<1x4xf32, #tpu.memory_space<vmem>>, vector<1x4xf32>
    %c0_23 = arith.constant 0 : index
    %c0_24 = arith.constant 0 : index
    %42 = vector.load %arg8[%c0_23, %c0_24] : memref<1x128xf32, #tpu.memory_space<vmem>>, vector<1x128xf32>
    %cst = arith.constant dense<0.000000e+00> : vector<64xf32>
    %43 = vector.multi_reduction <add>, %39, %cst [0] : vector<32x64xf32> to vector<64xf32>
    %44 = vector.shape_cast %43 : vector<64xf32> to vector<1x64xf32>
    %cst_25 = arith.constant dense<0.000000e+00> : vector<1x4xf32>
    %45 = tpu.matmul %44, %35, %cst_25 {dimension_numbers = #tpu.dot_dimension_numbers<[1], [0], [0], [1], [0, 0, 1, 1], [], []>} : vector<1x64xf32>, vector<64x4xf32>, vector<1x4xf32> -> vector<1x4xf32>
    %cst_26 = arith.constant 0.001953125 : f32
    %46 = vector.broadcast %cst_26 : f32 to vector<1x4xf32>
    %47 = arith.mulf %45, %46 : vector<1x4xf32>
    %cst_27 = arith.constant dense<0.000000e+00> : vector<1x64xf32>
    %48 = tpu.matmul %47, %36, %cst_27 {dimension_numbers = #tpu.dot_dimension_numbers<[1], [0], [0], [1], [0, 0, 1, 1], [], []>} : vector<1x4xf32>, vector<4x64xf32>, vector<1x64xf32> -> vector<1x64xf32>
    %49 = vector.broadcast %48 : vector<1x64xf32> to vector<32x64xf32>
    %50 = arith.subf %39, %49 : vector<32x64xf32>
    %51 = arith.mulf %50, %50 : vector<32x64xf32>
    %cst_28 = arith.constant dense<0.000000e+00> : vector<64xf32>
    %52 = vector.multi_reduction <add>, %51, %cst_28 [0] : vector<32x64xf32> to vector<64xf32>
    %53 = vector.shape_cast %52 : vector<64xf32> to vector<1x64xf32>
    %cst_29 = arith.constant dense<0.000000e+00> : vector<1x4xf32>
    %54 = tpu.matmul %53, %35, %cst_29 {dimension_numbers = #tpu.dot_dimension_numbers<[1], [0], [0], [1], [0, 0, 1, 1], [], []>} : vector<1x64xf32>, vector<64x4xf32>, vector<1x4xf32> -> vector<1x4xf32>
    %cst_30 = arith.constant 0.001953125 : f32
    %55 = vector.broadcast %cst_30 : f32 to vector<1x4xf32>
    %56 = arith.mulf %54, %55 : vector<1x4xf32>
    %cst_31 = arith.constant 9.99999974E-6 : f32
    %57 = vector.broadcast %cst_31 : f32 to vector<1x4xf32>
    %58 = arith.addf %56, %57 : vector<1x4xf32>
    %59 = math.rsqrt %58 : vector<1x4xf32>
    %60 = arith.mulf %40, %59 : vector<1x4xf32>
    %61 = tpu.concatenate %60, %41 in 0 : vector<1x4xf32>, vector<1x4xf32> -> vector<2x4xf32>
    %cst_32 = arith.constant dense<0.000000e+00> : vector<2x64xf32>
    %62 = tpu.matmul %61, %36, %cst_32 {dimension_numbers = #tpu.dot_dimension_numbers<[1], [0], [0], [1], [0, 0, 1, 1], [], []>} : vector<2x4xf32>, vector<4x64xf32>, vector<2x64xf32> -> vector<2x64xf32>
    %63 = vector.extract_strided_slice %62 {offsets = [0, 0], sizes = [1, 64], strides = [1, 1]} : vector<2x64xf32> to vector<1x64xf32>
    %64 = vector.broadcast %63 : vector<1x64xf32> to vector<32x64xf32>
    %65 = arith.mulf %50, %64 : vector<32x64xf32>
    %66 = vector.extract_strided_slice %62 {offsets = [1, 0], sizes = [1, 64], strides = [1, 1]} : vector<2x64xf32> to vector<1x64xf32>
    %67 = vector.broadcast %66 : vector<1x64xf32> to vector<32x64xf32>
    %68 = arith.addf %65, %67 : vector<32x64xf32>
    %cst_33 = arith.constant 0.000000e+00 : f32
    %69 = vector.broadcast %cst_33 : f32 to vector<32x64xf32>
    %70 = arith.cmpf ogt, %68, %69 : vector<32x64xf32>
    %71 = math.exp %68 : vector<32x64xf32>
    %cst_34 = arith.constant 1.000000e+00 : f32
    %72 = vector.broadcast %cst_34 : f32 to vector<32x64xf32>
    %73 = arith.subf %71, %72 : vector<32x64xf32>
    %cst_35 = arith.constant 1.67326319 : f32
    %74 = vector.broadcast %cst_35 : f32 to vector<32x64xf32>
    %75 = arith.mulf %74, %73 : vector<32x64xf32>
    %76 = arith.select %70, %68, %75 : vector<32x64xi1>, vector<32x64xf32>
    %cst_36 = arith.constant 1.05070102 : f32
    %77 = vector.broadcast %cst_36 : f32 to vector<32x64xf32>
    %78 = arith.mulf %77, %76 : vector<32x64xf32>
    %c1_i32_37 = arith.constant 1 : i32
    %79 = tpu.dynamic_rotate %78 by %c1_i32_37 dim 0 : vector<32x64xf32>, i32 -> vector<32x64xf32>
    %cst_38 = arith.constant 0.000000e+00 : f32
    %80 = vector.shape_cast %25 : vector<32x1xi1> to vector<32x1xi1>
    %81 = vector.broadcast %80 : vector<32x1xi1> to vector<32x64xi1>
    %82 = vector.broadcast %cst_38 : f32 to vector<32x64xf32>
    %83 = arith.select %81, %79, %82 : vector<32x64xi1>, vector<32x64xf32>
    %c0_39 = arith.constant 0 : index
    %c0_40 = arith.constant 0 : index
    %84 = vector.load %arg7[%c0_39, %c0_40] : memref<192x128xf32, #tpu.memory_space<vmem>>, vector<64x128xf32>
    %cst_41 = arith.constant dense<0.000000e+00> : vector<32x128xf32>
    %85 = tpu.matmul %83, %84, %cst_41 {dimension_numbers = #tpu.dot_dimension_numbers<[1], [0], [0], [1], [0, 0, 1, 1], [], []>} : vector<32x64xf32>, vector<64x128xf32>, vector<32x128xf32> -> vector<32x128xf32>
    %c64 = arith.constant 64 : index
    %c0_42 = arith.constant 0 : index
    %86 = vector.load %arg7[%c64, %c0_42] : memref<192x128xf32, #tpu.memory_space<vmem>>, vector<64x128xf32>
    %cst_43 = arith.constant dense<0.000000e+00> : vector<32x128xf32>
    %87 = tpu.matmul %78, %86, %cst_43 {dimension_numbers = #tpu.dot_dimension_numbers<[1], [0], [0], [1], [0, 0, 1, 1], [], []>} : vector<32x64xf32>, vector<64x128xf32>, vector<32x128xf32> -> vector<32x128xf32>
    %88 = arith.addf %85, %87 : vector<32x128xf32>
    %c31_i32 = arith.constant 31 : i32
    %89 = tpu.dynamic_rotate %78 by %c31_i32 dim 0 : vector<32x64xf32>, i32 -> vector<32x64xf32>
    %cst_44 = arith.constant 0.000000e+00 : f32
    %90 = vector.shape_cast %34 : vector<32x1xi1> to vector<32x1xi1>
    %91 = vector.broadcast %90 : vector<32x1xi1> to vector<32x64xi1>
    %92 = vector.broadcast %cst_44 : f32 to vector<32x64xf32>
    %93 = arith.select %91, %89, %92 : vector<32x64xi1>, vector<32x64xf32>
    %c128 = arith.constant 128 : index
    %c0_45 = arith.constant 0 : index
    %94 = vector.load %arg7[%c128, %c0_45] : memref<192x128xf32, #tpu.memory_space<vmem>>, vector<64x128xf32>
    %cst_46 = arith.constant dense<0.000000e+00> : vector<32x128xf32>
    %95 = tpu.matmul %93, %94, %cst_46 {dimension_numbers = #tpu.dot_dimension_numbers<[1], [0], [0], [1], [0, 0, 1, 1], [], []>} : vector<32x64xf32>, vector<64x128xf32>, vector<32x128xf32> -> vector<32x128xf32>
    %96 = arith.addf %88, %95 : vector<32x128xf32>
    %97 = vector.broadcast %42 : vector<1x128xf32> to vector<32x128xf32>
    %98 = arith.addf %96, %97 : vector<32x128xf32>
    %c0_47 = arith.constant 0 : index
    %c0_48 = arith.constant 0 : index
    %99 = vector.load %arg9[%c0_47, %c0_48] : memref<1x8xf32, #tpu.memory_space<vmem>>, vector<1x8xf32>
    %c0_49 = arith.constant 0 : index
    %c0_50 = arith.constant 0 : index
    %100 = vector.load %arg10[%c0_49, %c0_50] : memref<1x8xf32, #tpu.memory_space<vmem>>, vector<1x8xf32>
    %c0_51 = arith.constant 0 : index
    %c0_52 = arith.constant 0 : index
    %101 = vector.load %arg12[%c0_51, %c0_52] : memref<1x128xf32, #tpu.memory_space<vmem>>, vector<1x128xf32>
    %cst_53 = arith.constant dense<0.000000e+00> : vector<128xf32>
    %102 = vector.multi_reduction <add>, %98, %cst_53 [0] : vector<32x128xf32> to vector<128xf32>
    %103 = vector.shape_cast %102 : vector<128xf32> to vector<1x128xf32>
    %cst_54 = arith.constant dense<0.000000e+00> : vector<1x8xf32>
    %104 = tpu.matmul %103, %37, %cst_54 {dimension_numbers = #tpu.dot_dimension_numbers<[1], [0], [0], [1], [0, 0, 1, 1], [], []>} : vector<1x128xf32>, vector<128x8xf32>, vector<1x8xf32> -> vector<1x8xf32>
    %cst_55 = arith.constant 0.001953125 : f32
    %105 = vector.broadcast %cst_55 : f32 to vector<1x8xf32>
    %106 = arith.mulf %104, %105 : vector<1x8xf32>
    %cst_56 = arith.constant dense<0.000000e+00> : vector<1x128xf32>
    %107 = tpu.matmul %106, %38, %cst_56 {dimension_numbers = #tpu.dot_dimension_numbers<[1], [0], [0], [1], [0, 0, 1, 1], [], []>} : vector<1x8xf32>, vector<8x128xf32>, vector<1x128xf32> -> vector<1x128xf32>
    %108 = vector.broadcast %107 : vector<1x128xf32> to vector<32x128xf32>
    %109 = arith.subf %98, %108 : vector<32x128xf32>
    %110 = arith.mulf %109, %109 : vector<32x128xf32>
    %cst_57 = arith.constant dense<0.000000e+00> : vector<128xf32>
    %111 = vector.multi_reduction <add>, %110, %cst_57 [0] : vector<32x128xf32> to vector<128xf32>
    %112 = vector.shape_cast %111 : vector<128xf32> to vector<1x128xf32>
    %cst_58 = arith.constant dense<0.000000e+00> : vector<1x8xf32>
    %113 = tpu.matmul %112, %37, %cst_58 {dimension_numbers = #tpu.dot_dimension_numbers<[1], [0], [0], [1], [0, 0, 1, 1], [], []>} : vector<1x128xf32>, vector<128x8xf32>, vector<1x8xf32> -> vector<1x8xf32>
    %cst_59 = arith.constant 0.001953125 : f32
    %114 = vector.broadcast %cst_59 : f32 to vector<1x8xf32>
    %115 = arith.mulf %113, %114 : vector<1x8xf32>
    %cst_60 = arith.constant 9.99999974E-6 : f32
    %116 = vector.broadcast %cst_60 : f32 to vector<1x8xf32>
    %117 = arith.addf %115, %116 : vector<1x8xf32>
    %118 = math.rsqrt %117 : vector<1x8xf32>
    %119 = arith.mulf %99, %118 : vector<1x8xf32>
    %120 = tpu.concatenate %119, %100 in 0 : vector<1x8xf32>, vector<1x8xf32> -> vector<2x8xf32>
    %cst_61 = arith.constant dense<0.000000e+00> : vector<2x128xf32>
    %121 = tpu.matmul %120, %38, %cst_61 {dimension_numbers = #tpu.dot_dimension_numbers<[1], [0], [0], [1], [0, 0, 1, 1], [], []>} : vector<2x8xf32>, vector<8x128xf32>, vector<2x128xf32> -> vector<2x128xf32>
    %122 = vector.extract_strided_slice %121 {offsets = [0, 0], sizes = [1, 128], strides = [1, 1]} : vector<2x128xf32> to vector<1x128xf32>
    %123 = vector.broadcast %122 : vector<1x128xf32> to vector<32x128xf32>
    %124 = arith.mulf %109, %123 : vector<32x128xf32>
    %125 = vector.extract_strided_slice %121 {offsets = [1, 0], sizes = [1, 128], strides = [1, 1]} : vector<2x128xf32> to vector<1x128xf32>
    %126 = vector.broadcast %125 : vector<1x128xf32> to vector<32x128xf32>
    %127 = arith.addf %124, %126 : vector<32x128xf32>
    %cst_62 = arith.constant 0.000000e+00 : f32
    %128 = vector.broadcast %cst_62 : f32 to vector<32x128xf32>
    %129 = arith.cmpf oge, %127, %128 : vector<32x128xf32>
    %cst_63 = arith.constant 0.00999999977 : f32
    %130 = vector.broadcast %cst_63 : f32 to vector<32x128xf32>
    %131 = arith.mulf %130, %127 : vector<32x128xf32>
    %132 = arith.select %129, %127, %131 : vector<32x128xi1>, vector<32x128xf32>
    %c1_i32_64 = arith.constant 1 : i32
    %133 = tpu.dynamic_rotate %132 by %c1_i32_64 dim 0 : vector<32x128xf32>, i32 -> vector<32x128xf32>
    %cst_65 = arith.constant 0.000000e+00 : f32
    %134 = vector.shape_cast %25 : vector<32x1xi1> to vector<32x1xi1>
    %135 = vector.broadcast %134 : vector<32x1xi1> to vector<32x128xi1>
    %136 = vector.broadcast %cst_65 : f32 to vector<32x128xf32>
    %137 = arith.select %135, %133, %136 : vector<32x128xi1>, vector<32x128xf32>
    %c0_66 = arith.constant 0 : index
    %c0_67 = arith.constant 0 : index
    %138 = vector.load %arg11[%c0_66, %c0_67] : memref<384x128xf32, #tpu.memory_space<vmem>>, vector<128x128xf32>
    %cst_68 = arith.constant dense<0.000000e+00> : vector<32x128xf32>
    %139 = tpu.matmul %137, %138, %cst_68 {dimension_numbers = #tpu.dot_dimension_numbers<[1], [0], [0], [1], [0, 0, 1, 1], [], []>} : vector<32x128xf32>, vector<128x128xf32>, vector<32x128xf32> -> vector<32x128xf32>
    %c128_69 = arith.constant 128 : index
    %c0_70 = arith.constant 0 : index
    %140 = vector.load %arg11[%c128_69, %c0_70] : memref<384x128xf32, #tpu.memory_space<vmem>>, vector<128x128xf32>
    %cst_71 = arith.constant dense<0.000000e+00> : vector<32x128xf32>
    %141 = tpu.matmul %132, %140, %cst_71 {dimension_numbers = #tpu.dot_dimension_numbers<[1], [0], [0], [1], [0, 0, 1, 1], [], []>} : vector<32x128xf32>, vector<128x128xf32>, vector<32x128xf32> -> vector<32x128xf32>
    %142 = arith.addf %139, %141 : vector<32x128xf32>
    %c31_i32_72 = arith.constant 31 : i32
    %143 = tpu.dynamic_rotate %132 by %c31_i32_72 dim 0 : vector<32x128xf32>, i32 -> vector<32x128xf32>
    %cst_73 = arith.constant 0.000000e+00 : f32
    %144 = vector.shape_cast %34 : vector<32x1xi1> to vector<32x1xi1>
    %145 = vector.broadcast %144 : vector<32x1xi1> to vector<32x128xi1>
    %146 = vector.broadcast %cst_73 : f32 to vector<32x128xf32>
    %147 = arith.select %145, %143, %146 : vector<32x128xi1>, vector<32x128xf32>
    %c256 = arith.constant 256 : index
    %c0_74 = arith.constant 0 : index
    %148 = vector.load %arg11[%c256, %c0_74] : memref<384x128xf32, #tpu.memory_space<vmem>>, vector<128x128xf32>
    %cst_75 = arith.constant dense<0.000000e+00> : vector<32x128xf32>
    %149 = tpu.matmul %147, %148, %cst_75 {dimension_numbers = #tpu.dot_dimension_numbers<[1], [0], [0], [1], [0, 0, 1, 1], [], []>} : vector<32x128xf32>, vector<128x128xf32>, vector<32x128xf32> -> vector<32x128xf32>
    %150 = arith.addf %142, %149 : vector<32x128xf32>
    %151 = vector.broadcast %101 : vector<1x128xf32> to vector<32x128xf32>
    %152 = arith.addf %150, %151 : vector<32x128xf32>
    %153 = arith.addf %152, %98 : vector<32x128xf32>
    %c0_76 = arith.constant 0 : index
    %c0_77 = arith.constant 0 : index
    %154 = vector.load %arg13[%c0_76, %c0_77] : memref<1x8xf32, #tpu.memory_space<vmem>>, vector<1x8xf32>
    %c0_78 = arith.constant 0 : index
    %c0_79 = arith.constant 0 : index
    %155 = vector.load %arg14[%c0_78, %c0_79] : memref<1x8xf32, #tpu.memory_space<vmem>>, vector<1x8xf32>
    %c0_80 = arith.constant 0 : index
    %c0_81 = arith.constant 0 : index
    %156 = vector.load %arg16[%c0_80, %c0_81] : memref<1x128xf32, #tpu.memory_space<vmem>>, vector<1x128xf32>
    %cst_82 = arith.constant dense<0.000000e+00> : vector<128xf32>
    %157 = vector.multi_reduction <add>, %153, %cst_82 [0] : vector<32x128xf32> to vector<128xf32>
    %158 = vector.shape_cast %157 : vector<128xf32> to vector<1x128xf32>
    %cst_83 = arith.constant dense<0.000000e+00> : vector<1x8xf32>
    %159 = tpu.matmul %158, %37, %cst_83 {dimension_numbers = #tpu.dot_dimension_numbers<[1], [0], [0], [1], [0, 0, 1, 1], [], []>} : vector<1x128xf32>, vector<128x8xf32>, vector<1x8xf32> -> vector<1x8xf32>
    %cst_84 = arith.constant 0.001953125 : f32
    %160 = vector.broadcast %cst_84 : f32 to vector<1x8xf32>
    %161 = arith.mulf %159, %160 : vector<1x8xf32>
    %cst_85 = arith.constant dense<0.000000e+00> : vector<1x128xf32>
    %162 = tpu.matmul %161, %38, %cst_85 {dimension_numbers = #tpu.dot_dimension_numbers<[1], [0], [0], [1], [0, 0, 1, 1], [], []>} : vector<1x8xf32>, vector<8x128xf32>, vector<1x128xf32> -> vector<1x128xf32>
    %163 = vector.broadcast %162 : vector<1x128xf32> to vector<32x128xf32>
    %164 = arith.subf %153, %163 : vector<32x128xf32>
    %165 = arith.mulf %164, %164 : vector<32x128xf32>
    %cst_86 = arith.constant dense<0.000000e+00> : vector<128xf32>
    %166 = vector.multi_reduction <add>, %165, %cst_86 [0] : vector<32x128xf32> to vector<128xf32>
    %167 = vector.shape_cast %166 : vector<128xf32> to vector<1x128xf32>
    %cst_87 = arith.constant dense<0.000000e+00> : vector<1x8xf32>
    %168 = tpu.matmul %167, %37, %cst_87 {dimension_numbers = #tpu.dot_dimension_numbers<[1], [0], [0], [1], [0, 0, 1, 1], [], []>} : vector<1x128xf32>, vector<128x8xf32>, vector<1x8xf32> -> vector<1x8xf32>
    %cst_88 = arith.constant 0.001953125 : f32
    %169 = vector.broadcast %cst_88 : f32 to vector<1x8xf32>
    %170 = arith.mulf %168, %169 : vector<1x8xf32>
    %cst_89 = arith.constant 9.99999974E-6 : f32
    %171 = vector.broadcast %cst_89 : f32 to vector<1x8xf32>
    %172 = arith.addf %170, %171 : vector<1x8xf32>
    %173 = math.rsqrt %172 : vector<1x8xf32>
    %174 = arith.mulf %154, %173 : vector<1x8xf32>
    %175 = tpu.concatenate %174, %155 in 0 : vector<1x8xf32>, vector<1x8xf32> -> vector<2x8xf32>
    %cst_90 = arith.constant dense<0.000000e+00> : vector<2x128xf32>
    %176 = tpu.matmul %175, %38, %cst_90 {dimension_numbers = #tpu.dot_dimension_numbers<[1], [0], [0], [1], [0, 0, 1, 1], [], []>} : vector<2x8xf32>, vector<8x128xf32>, vector<2x128xf32> -> vector<2x128xf32>
    %177 = vector.extract_strided_slice %176 {offsets = [0, 0], sizes = [1, 128], strides = [1, 1]} : vector<2x128xf32> to vector<1x128xf32>
    %178 = vector.broadcast %177 : vector<1x128xf32> to vector<32x128xf32>
    %179 = arith.mulf %164, %178 : vector<32x128xf32>
    %180 = vector.extract_strided_slice %176 {offsets = [1, 0], sizes = [1, 128], strides = [1, 1]} : vector<2x128xf32> to vector<1x128xf32>
    %181 = vector.broadcast %180 : vector<1x128xf32> to vector<32x128xf32>
    %182 = arith.addf %179, %181 : vector<32x128xf32>
    %cst_91 = arith.constant 0.000000e+00 : f32
    %183 = vector.broadcast %cst_91 : f32 to vector<32x128xf32>
    %184 = arith.cmpf oge, %182, %183 : vector<32x128xf32>
    %cst_92 = arith.constant 0.00999999977 : f32
    %185 = vector.broadcast %cst_92 : f32 to vector<32x128xf32>
    %186 = arith.mulf %185, %182 : vector<32x128xf32>
    %187 = arith.select %184, %182, %186 : vector<32x128xi1>, vector<32x128xf32>
    %c1_i32_93 = arith.constant 1 : i32
    %188 = tpu.dynamic_rotate %187 by %c1_i32_93 dim 0 : vector<32x128xf32>, i32 -> vector<32x128xf32>
    %cst_94 = arith.constant 0.000000e+00 : f32
    %189 = vector.shape_cast %25 : vector<32x1xi1> to vector<32x1xi1>
    %190 = vector.broadcast %189 : vector<32x1xi1> to vector<32x128xi1>
    %191 = vector.broadcast %cst_94 : f32 to vector<32x128xf32>
    %192 = arith.select %190, %188, %191 : vector<32x128xi1>, vector<32x128xf32>
    %c0_95 = arith.constant 0 : index
    %c0_96 = arith.constant 0 : index
    %193 = vector.load %arg15[%c0_95, %c0_96] : memref<384x128xf32, #tpu.memory_space<vmem>>, vector<128x128xf32>
    %cst_97 = arith.constant dense<0.000000e+00> : vector<32x128xf32>
    %194 = tpu.matmul %192, %193, %cst_97 {dimension_numbers = #tpu.dot_dimension_numbers<[1], [0], [0], [1], [0, 0, 1, 1], [], []>} : vector<32x128xf32>, vector<128x128xf32>, vector<32x128xf32> -> vector<32x128xf32>
    %c128_98 = arith.constant 128 : index
    %c0_99 = arith.constant 0 : index
    %195 = vector.load %arg15[%c128_98, %c0_99] : memref<384x128xf32, #tpu.memory_space<vmem>>, vector<128x128xf32>
    %cst_100 = arith.constant dense<0.000000e+00> : vector<32x128xf32>
    %196 = tpu.matmul %187, %195, %cst_100 {dimension_numbers = #tpu.dot_dimension_numbers<[1], [0], [0], [1], [0, 0, 1, 1], [], []>} : vector<32x128xf32>, vector<128x128xf32>, vector<32x128xf32> -> vector<32x128xf32>
    %197 = arith.addf %194, %196 : vector<32x128xf32>
    %c31_i32_101 = arith.constant 31 : i32
    %198 = tpu.dynamic_rotate %187 by %c31_i32_101 dim 0 : vector<32x128xf32>, i32 -> vector<32x128xf32>
    %cst_102 = arith.constant 0.000000e+00 : f32
    %199 = vector.shape_cast %34 : vector<32x1xi1> to vector<32x1xi1>
    %200 = vector.broadcast %199 : vector<32x1xi1> to vector<32x128xi1>
    %201 = vector.broadcast %cst_102 : f32 to vector<32x128xf32>
    %202 = arith.select %200, %198, %201 : vector<32x128xi1>, vector<32x128xf32>
    %c256_103 = arith.constant 256 : index
    %c0_104 = arith.constant 0 : index
    %203 = vector.load %arg15[%c256_103, %c0_104] : memref<384x128xf32, #tpu.memory_space<vmem>>, vector<128x128xf32>
    %cst_105 = arith.constant dense<0.000000e+00> : vector<32x128xf32>
    %204 = tpu.matmul %202, %203, %cst_105 {dimension_numbers = #tpu.dot_dimension_numbers<[1], [0], [0], [1], [0, 0, 1, 1], [], []>} : vector<32x128xf32>, vector<128x128xf32>, vector<32x128xf32> -> vector<32x128xf32>
    %205 = arith.addf %197, %204 : vector<32x128xf32>
    %206 = vector.broadcast %156 : vector<1x128xf32> to vector<32x128xf32>
    %207 = arith.addf %205, %206 : vector<32x128xf32>
    %208 = arith.addf %207, %153 : vector<32x128xf32>
    %c120_i32 = arith.constant 120 : i32
    %209 = tpu.dynamic_rotate %208 by %c120_i32 dim 1 : vector<32x128xf32>, i32 -> vector<32x128xf32>
    %210 = arith.maximumf %208, %209 : vector<32x128xf32>
    %211 = vector.shape_cast %210 : vector<32x128xf32> to vector<16x2x128xf32>
    %cst_106 = arith.constant dense<0xFF800000> : vector<16x128xf32>
    %212 = vector.multi_reduction <maximumf>, %211, %cst_106 [1] : vector<16x2x128xf32> to vector<16x128xf32>
    %c0_107 = arith.constant 0 : index
    %c0_108 = arith.constant 0 : index
    %213 = vector.load %arg17[%c0_107, %c0_108] : memref<16x128xf32, #tpu.memory_space<vmem>>, vector<16x128xf32>
    tpu.vector_store %arg17[%c0_107, %c0_108], %212 {strides = array<i32>} : memref<16x128xf32, #tpu.memory_space<vmem>>, vector<16x128xf32>,
    return
  }
}

</mosaic_0001>

<llo_original>
// kernel: tile.34
$region0: #{tile.34}
  %s0 = inlined_call_operand.vmem [shape: f32[16,8,8], index: 0, kind: input, shape index: {}]
  %s1 = inlined_call_operand.vmem [shape: f32[128,8], index: 1, kind: output, shape index: {}]
  %s2 = smov 3
  %v3 = vld [vmem:[%s0] ss:$16 sm:%s2]
  %s4 = smov 12
  %v5 = vld [vmem:[%s0] ss:$16 sm:%s4]
  %vm6 = vcmask 1043458
  %v7 = vsel %vm6, %v5, %v3
  %s8 = smov 48
  %v9 = vld [vmem:[%s0] ss:$16 sm:%s8]
  %vm10 = vcmask 1045508
  %v11 = vsel %vm10, %v9, %v7
  %s12 = smov 192
  %v13 = vld [vmem:[%s0] ss:$16 sm:%s12]
  %vm14 = vcmask 1047558
  %v15 = vsel %vm14, %v13, %v11
  %vm16 = vcmask 64512
  %17 = vst.msk [vmem:[%s1] sm:$0xff] %vm16, %v15
  %s18 = scalar_lea.vmem %s0, 15
  %s19 = smov 3
  %v20 = vld [vmem:[%s18] ss:$16 sm:%s19]
  %s21 = scalar_lea.vmem %s0, 15
  %s22 = smov 12
  %v23 = vld [vmem:[%s21] ss:$16 sm:%s22]
  %vm24 = vcmask 1043458
  %v25 = vsel %vm24, %v23, %v20
  %s26 = scalar_lea.vmem %s0, 15
  %s27 = smov 48
  %v28 = vld [vmem:[%s26] ss:$16 sm:%s27]
  %vm29 = vcmask 1045508
  %v30 = vsel %vm29, %v28, %v25
  %s31 = scalar_lea.vmem %s0, 15
  %s32 = smov 192
  %v33 = vld [vmem:[%s31] ss:$16 sm:%s32]
  %vm34 = vcmask 1047558
  %v35 = vsel %vm34, %v33, %v30
  %36 = vrot.lane.b32.xlu0 %v35, 120
  %v37 = vpop.permute.xlu0 %36
  %vm38 = vcmask 1048512
  %39 = vst.msk [vmem:[%s1] sm:$0xff] %vm38, %v37
  %s40 = scalar_lea.vmem %s0, 14
  %s41 = smov 3
  %v42 = vld [vmem:[%s40] ss:$16 sm:%s41]
  %s43 = scalar_lea.vmem %s0, 14
  %s44 = smov 12
  %v45 = vld [vmem:[%s43] ss:$16 sm:%s44]
  %vm46 = vcmask 1043458
  %v47 = vsel %vm46, %v45, %v42
  %s48 = scalar_lea.vmem %s0, 14
  %s49 = smov 48
  %v50 = vld [vmem:[%s48] ss:$16 sm:%s49]
  %vm51 = vcmask 1045508
  %v52 = vsel %vm51, %v50, %v47
  %s53 = scalar_lea.vmem %s0, 14
  %s54 = smov 192
  %v55 = vld [vmem:[%s53] ss:$16 sm:%s54]
  %vm56 = vcmask 1047558
  %v57 = vsel %vm56, %v55, %v52
  %58 = vrot.lane.b32.xlu0 %v57, 112
  %v59 = vpop.permute.xlu0 %58
  %vm60 = vcmask 982912
  %61 = vst.msk [vmem:[%s1] sm:$0xff] %vm60, %v59
  %s62 = scalar_lea.vmem %s0, 13
  %s63 = smov 3
  %v64 = vld [vmem:[%s62] ss:$16 sm:%s63]
  %s65 = scalar_lea.vmem %s0, 13
  %s66 = smov 12
  %v67 = vld [vmem:[%s65] ss:$16 sm:%s66]
  %vm68 = vcmask 1043458
  %v69 = vsel %vm68, %v67, %v64
  %s70 = scalar_lea.vmem %s0, 13
  %s71 = smov 48
  %v72 = vld [vmem:[%s70] ss:$16 sm:%s71]
  %vm73 = vcmask 1045508
  %v74 = vsel %vm73, %v72, %v69
  %s75 = scalar_lea.vmem %s0, 13
  %s76 = smov 192
  %v77 = vld [vmem:[%s75] ss:$16 sm:%s76]
  %vm78 = vcmask 1047558
  %v79 = vsel %vm78, %v77, %v74
  %80 = vrot.lane.b32.xlu0 %v79, 104
  %v81 = vpop.permute.xlu0 %80
  %vm82 = vcmask 917312
  %83 = vst.msk [vmem:[%s1] sm:$0xff] %vm82, %v81
  %s84 = scalar_lea.vmem %s0, 12
  %s85 = smov 3
  %v86 = vld [vmem:[%s84] ss:$16 sm:%s85]
  %s87 = scalar_lea.vmem %s0, 12
  %s88 = smov 12
  %v89 = vld [vmem:[%s87] ss:$16 sm:%s88]
  %vm90 = vcmask 1043458
  %v91 = vsel %vm90, %v89, %v86
  %s92 = scalar_lea.vmem %s0, 12
  %s93 = smov 48
  %v94 = vld [vmem:[%s92] ss:$16 sm:%s93]
  %vm95 = vcmask 1045508
  %v96 = vsel %vm95, %v94, %v91
  %s97 = scalar_lea.vmem %s0, 12
  %s98 = smov 192
  %v99 = vld [vmem:[%s97] ss:$16 sm:%s98]
  %vm100 = vcmask 1047558
  %v101 = vsel %vm100, %v99, %v96
  %102 = vrot.lane.b32.xlu0 %v101, 96
  %v103 = vpop.permute.xlu0 %102
  %vm104 = vcmask 851712
  %105 = vst.msk [vmem:[%s1] sm:$0xff] %vm104, %v103
  %s106 = scalar_lea.vmem %s0, 11
  %s107 = smov 3
  %v108 = vld [vmem:[%s106] ss:$16 sm:%s107]
  %s109 = scalar_lea.vmem %s0, 11
  %s110 = smov 12
  %v111 = vld [vmem:[%s109] ss:$16 sm:%s110]
  %vm112 = vcmask 1043458
  %v113 = vsel %vm112, %v111, %v108
  %s114 = scalar_lea.vmem %s0, 11
  %s115 = smov 48
  %v116 = vld [vmem:[%s114] ss:$16 sm:%s115]
  %vm117 = vcmask 1045508
  %v118 = vsel %vm117, %v116, %v113
  %s119 = scalar_lea.vmem %s0, 11
  %s120 = smov 192
  %v121 = vld [vmem:[%s119] ss:$16 sm:%s120]
  %vm122 = vcmask 1047558
  %v123 = vsel %vm122, %v121, %v118
  %124 = vrot.lane.b32.xlu0 %v123, 88
  %v125 = vpop.permute.xlu0 %124
  %vm126 = vcmask 786112
  %127 = vst.msk [vmem:[%s1] sm:$0xff] %vm126, %v125
  %s128 = scalar_lea.vmem %s0, 10
  %s129 = smov 3
  %v130 = vld [vmem:[%s128] ss:$16 sm:%s129]
  %s131 = scalar_lea.vmem %s0, 10
  %s132 = smov 12
  %v133 = vld [vmem:[%s131] ss:$16 sm:%s132]
  %vm134 = vcmask 1043458
  %v135 = vsel %vm134, %v133, %v130
  %s136 = scalar_lea.vmem %s0, 10
  %s137 = smov 48
  %v138 = vld [vmem:[%s136] ss:$16 sm:%s137]
  %vm139 = vcmask 1045508
  %v140 = vsel %vm139, %v138, %v135
  %s141 = scalar_lea.vmem %s0, 10
  %s142 = smov 192
  %v143 = vld [vmem:[%s141] ss:$16 sm:%s142]
  %vm144 = vcmask 1047558
  %v145 = vsel %vm144, %v143, %v140
  %146 = vrot.lane.b32.xlu0 %v145, 80
  %v147 = vpop.permute.xlu0 %146
  %vm148 = vcmask 720512
  %149 = vst.msk [vmem:[%s1] sm:$0xff] %vm148, %v147
  %s150 = scalar_lea.vmem %s0, 9
  %s151 = smov 3
  %v152 = vld [vmem:[%s150] ss:$16 sm:%s151]
  %s153 = scalar_lea.vmem %s0, 9
  %s154 = smov 12
  %v155 = vld [vmem:[%s153] ss:$16 sm:%s154]
  %vm156 = vcmask 1043458
  %v157 = vsel %vm156, %v155, %v152
  %s158 = scalar_lea.vmem %s0, 9
  %s159 = smov 48
  %v160 = vld [vmem:[%s158] ss:$16 sm:%s159]
  %vm161 = vcmask 1045508
  %v162 = vsel %vm161, %v160, %v157
  %s163 = scalar_lea.vmem %s0, 9
  %s164 = smov 192
  %v165 = vld [vmem:[%s163] ss:$16 sm:%s164]
  %vm166 = vcmask 1047558
  %v167 = vsel %vm166, %v165, %v162
  %168 = vrot.lane.b32.xlu0 %v167, 72
  %v169 = vpop.permute.xlu0 %168
  %vm170 = vcmask 654912
  %171 = vst.msk [vmem:[%s1] sm:$0xff] %vm170, %v169
  %s172 = scalar_lea.vmem %s0, 8
  %s173 = smov 3
  %v174 = vld [vmem:[%s172] ss:$16 sm:%s173]
  %s175 = scalar_lea.vmem %s0, 8
  %s176 = smov 12
  %v177 = vld [vmem:[%s175] ss:$16 sm:%s176]
  %vm178 = vcmask 1043458
  %v179 = vsel %vm178, %v177, %v174
  %s180 = scalar_lea.vmem %s0, 8
  %s181 = smov 48
  %v182 = vld [vmem:[%s180] ss:$16 sm:%s181]
  %vm183 = vcmask 1045508
  %v184 = vsel %vm183, %v182, %v179
  %s185 = scalar_lea.vmem %s0, 8
  %s186 = smov 192
  %v187 = vld [vmem:[%s185] ss:$16 sm:%s186]
  %vm188 = vcmask 1047558
  %v189 = vsel %vm188, %v187, %v184
  %190 = vrot.lane.b32.xlu0 %v189, 64
  %v191 = vpop.permute.xlu0 %190
  %vm192 = vcmask 589312
  %193 = vst.msk [vmem:[%s1] sm:$0xff] %vm192, %v191
  %s194 = scalar_lea.vmem %s0, 7
  %s195 = smov 3
  %v196 = vld [vmem:[%s194] ss:$16 sm:%s195]
  %s197 = scalar_lea.vmem %s0, 7
  %s198 = smov 12
  %v199 = vld [vmem:[%s197] ss:$16 sm:%s198]
  %vm200 = vcmask 1043458
  %v201 = vsel %vm200, %v199, %v196
  %s202 = scalar_lea.vmem %s0, 7
  %s203 = smov 48
  %v204 = vld [vmem:[%s202] ss:$16 sm:%s203]
  %vm205 = vcmask 1045508
  %v206 = vsel %vm205, %v204, %v201
  %s207 = scalar_lea.vmem %s0, 7
  %s208 = smov 192
  %v209 = vld [vmem:[%s207] ss:$16 sm:%s208]
  %vm210 = vcmask 1047558
  %v211 = vsel %vm210, %v209, %v206
  %212 = vrot.lane.b32.xlu0 %v211, 56
  %v213 = vpop.permute.xlu0 %212
  %vm214 = vcmask 523712
  %215 = vst.msk [vmem:[%s1] sm:$0xff] %vm214, %v213
  %s216 = scalar_lea.vmem %s0, 6
  %s217 = smov 3
  %v218 = vld [vmem:[%s216] ss:$16 sm:%s217]
  %s219 = scalar_lea.vmem %s0, 6
  %s220 = smov 12
  %v221 = vld [vmem:[%s219] ss:$16 sm:%s220]
  %vm222 = vcmask 1043458
  %v223 = vsel %vm222, %v221, %v218
  %s224 = scalar_lea.vmem %s0, 6
  %s225 = smov 48
  %v226 = vld [vmem:[%s224] ss:$16 sm:%s225]
  %vm227 = vcmask 1045508
  %v228 = vsel %vm227, %v226, %v223
  %s229 = scalar_lea.vmem %s0, 6
  %s230 = smov 192
  %v231 = vld [vmem:[%s229] ss:$16 sm:%s230]
  %vm232 = vcmask 1047558
  %v233 = vsel %vm232, %v231, %v228
  %234 = vrot.lane.b32.xlu0 %v233, 48
  %v235 = vpop.permute.xlu0 %234
  %vm236 = vcmask 458112
  %237 = vst.msk [vmem:[%s1] sm:$0xff] %vm236, %v235
  %s238 = scalar_lea.vmem %s0, 5
  %s239 = smov 3
  %v240 = vld [vmem:[%s238] ss:$16 sm:%s239]
  %s241 = scalar_lea.vmem %s0, 5
  %s242 = smov 12
  %v243 = vld [vmem:[%s241] ss:$16 sm:%s242]
  %vm244 = vcmask 1043458
  %v245 = vsel %vm244, %v243, %v240
  %s246 = scalar_lea.vmem %s0, 5
  %s247 = smov 48
  %v248 = vld [vmem:[%s246] ss:$16 sm:%s247]
  %vm249 = vcmask 1045508
  %v250 = vsel %vm249, %v248, %v245
  %s251 = scalar_lea.vmem %s0, 5
  %s252 = smov 192
  %v253 = vld [vmem:[%s251] ss:$16 sm:%s252]
  %vm254 = vcmask 1047558
  %v255 = vsel %vm254, %v253, %v250
  %256 = vrot.lane.b32.xlu0 %v255, 40
  %v257 = vpop.permute.xlu0 %256
  %vm258 = vcmask 392512
  %259 = vst.msk [vmem:[%s1] sm:$0xff] %vm258, %v257
  %s260 = scalar_lea.vmem %s0, 4
  %s261 = smov 3
  %v262 = vld [vmem:[%s260] ss:$16 sm:%s261]
  %s263 = scalar_lea.vmem %s0, 4
  %s264 = smov 12
  %v265 = vld [vmem:[%s263] ss:$16 sm:%s264]
  %vm266 = vcmask 1043458
  %v267 = vsel %vm266, %v265, %v262
  %s268 = scalar_lea.vmem %s0, 4
  %s269 = smov 48
  %v270 = vld [vmem:[%s268] ss:$16 sm:%s269]
  %vm271 = vcmask 1045508
  %v272 = vsel %vm271, %v270, %v267
  %s273 = scalar_lea.vmem %s0, 4
  %s274 = smov 192
  %v275 = vld [vmem:[%s273] ss:$16 sm:%s274]
  %vm276 = vcmask 1047558
  %v277 = vsel %vm276, %v275, %v272
  %278 = vrot.lane.b32.xlu0 %v277, 32
  %v279 = vpop.permute.xlu0 %278
  %vm280 = vcmask 326912
  %281 = vst.msk [vmem:[%s1] sm:$0xff] %vm280, %v279
  %s282 = scalar_lea.vmem %s0, 3
  %s283 = smov 3
  %v284 = vld [vmem:[%s282] ss:$16 sm:%s283]
  %s285 = scalar_lea.vmem %s0, 3
  %s286 = smov 12
  %v287 = vld [vmem:[%s285] ss:$16 sm:%s286]
  %vm288 = vcmask 1043458
  %v289 = vsel %vm288, %v287, %v284
  %s290 = scalar_lea.vmem %s0, 3
  %s291 = smov 48
  %v292 = vld [vmem:[%s290] ss:$16 sm:%s291]
  %vm293 = vcmask 1045508
  %v294 = vsel %vm293, %v292, %v289
  %s295 = scalar_lea.vmem %s0, 3
  %s296 = smov 192
  %v297 = vld [vmem:[%s295] ss:$16 sm:%s296]
  %vm298 = vcmask 1047558
  %v299 = vsel %vm298, %v297, %v294
  %300 = vrot.lane.b32.xlu0 %v299, 24
  %v301 = vpop.permute.xlu0 %300
  %vm302 = vcmask 261312
  %303 = vst.msk [vmem:[%s1] sm:$0xff] %vm302, %v301
  %s304 = scalar_lea.vmem %s0, 2
  %s305 = smov 3
  %v306 = vld [vmem:[%s304] ss:$16 sm:%s305]
  %s307 = scalar_lea.vmem %s0, 2
  %s308 = smov 12
  %v309 = vld [vmem:[%s307] ss:$16 sm:%s308]
  %vm310 = vcmask 1043458
  %v311 = vsel %vm310, %v309, %v306
  %s312 = scalar_lea.vmem %s0, 2
  %s313 = smov 48
  %v314 = vld [vmem:[%s312] ss:$16 sm:%s313]
  %vm315 = vcmask 1045508
  %v316 = vsel %vm315, %v314, %v311
  %s317 = scalar_lea.vmem %s0, 2
  %s318 = smov 192
  %v319 = vld [vmem:[%s317] ss:$16 sm:%s318]
  %vm320 = vcmask 1047558
  %v321 = vsel %vm320, %v319, %v316
  %322 = vrot.lane.b32.xlu0 %v321, 16
  %v323 = vpop.permute.xlu0 %322
  %vm324 = vcmask 195712
  %325 = vst.msk [vmem:[%s1] sm:$0xff] %vm324, %v323
  %s326 = scalar_lea.vmem %s0, 1
  %s327 = smov 3
  %v328 = vld [vmem:[%s326] ss:$16 sm:%s327]
  %s329 = scalar_lea.vmem %s0, 1
  %s330 = smov 12
  %v331 = vld [vmem:[%s329] ss:$16 sm:%s330]
  %vm332 = vcmask 1043458
  %v333 = vsel %vm332, %v331, %v328
  %s334 = scalar_lea.vmem %s0, 1
  %s335 = smov 48
  %v336 = vld [vmem:[%s334] ss:$16 sm:%s335]
  %vm337 = vcmask 1045508
  %v338 = vsel %vm337, %v336, %v333
  %s339 = scalar_lea.vmem %s0, 1
  %s340 = smov 192
  %v341 = vld [vmem:[%s339] ss:$16 sm:%s340]
  %vm342 = vcmask 1047558
  %v343 = vsel %vm342, %v341, %v338
  %344 = vrot.lane.b32.xlu0 %v343, 8
  %v345 = vpop.permute.xlu0 %344
  %vm346 = vcmask 130112
  %347 = vst.msk [vmem:[%s1] sm:$0xff] %vm346, %v345

// kernel: tile.29
$region0: #{tile.29}
  %s0 = inlined_call_operand.vmem [shape: f32[16,4,4], index: 0, kind: input, shape index: {}]
  %s1 = inlined_call_operand.vmem [shape: f32[64,4], index: 1, kind: output, shape index: {}]
  $region1: #{tile.29} parent=0
    #allocation0 [shape = 'u8[4096]{0}', space=vmem, size = 0x1000, scoped, tag = 'scoped mem for output reshape']
    %s2 = smov 3
    %v3 = vld [vmem:[%s0] ss:$16 sm:%s2]
    %s4 = smov 12
    %v5 = vld [vmem:[%s0] ss:$16 sm:%s4]
    %vm6 = vcmask 1043458
    %v7 = vsel %vm6, %v5, %v3
    %vm8 = vcmask 31744
    %9 = vst.msk [vmem:[#allocation0] sm:$0xf] %vm8, %v7
    %s10 = scalar_lea.vmem %s0, 15
    %s11 = smov 3
    %v12 = vld [vmem:[%s10] ss:$16 sm:%s11]
    %s13 = scalar_lea.vmem %s0, 15
    %s14 = smov 12
    %v15 = vld [vmem:[%s13] ss:$16 sm:%s14]
    %vm16 = vcmask 1043458
    %v17 = vsel %vm16, %v15, %v12
    %18 = vrot.lane.b32.xlu0 %v17, 60
    %v19 = vpop.permute.xlu0 %18
    %vm20 = vcmask 523744
    %21 = vst.msk [vmem:[#allocation0] sm:$0xf] %vm20, %v19
    %s22 = scalar_lea.vmem %s0, 14
    %s23 = smov 3
    %v24 = vld [vmem:[%s22] ss:$16 sm:%s23]
    %s25 = scalar_lea.vmem %s0, 14
    %s26 = smov 12
    %v27 = vld [vmem:[%s25] ss:$16 sm:%s26]
    %vm28 = vcmask 1043458
    %v29 = vsel %vm28, %v27, %v24
    %30 = vrot.lane.b32.xlu0 %v29, 56
    %v31 = vpop.permute.xlu0 %30
    %vm32 = vcmask 490944
    %33 = vst.msk [vmem:[#allocation0] sm:$0xf] %vm32, %v31
    %s34 = scalar_lea.vmem %s0, 13
    %s35 = smov 3
    %v36 = vld [vmem:[%s34] ss:$16 sm:%s35]
    %s37 = scalar_lea.vmem %s0, 13
    %s38 = smov 12
    %v39 = vld [vmem:[%s37] ss:$16 sm:%s38]
    %vm40 = vcmask 1043458
    %v41 = vsel %vm40, %v39, %v36
    %42 = vrot.lane.b32.xlu0 %v41, 52
    %v43 = vpop.permute.xlu0 %42
    %vm44 = vcmask 458144
    %45 = vst.msk [vmem:[#allocation0] sm:$0xf] %vm44, %v43
    %s46 = scalar_lea.vmem %s0, 12
    %s47 = smov 3
    %v48 = vld [vmem:[%s46] ss:$16 sm:%s47]
    %s49 = scalar_lea.vmem %s0, 12
    %s50 = smov 12
    %v51 = vld [vmem:[%s49] ss:$16 sm:%s50]
    %vm52 = vcmask 1043458
    %v53 = vsel %vm52, %v51, %v48
    %54 = vrot.lane.b32.xlu0 %v53, 48
    %v55 = vpop.permute.xlu0 %54
    %vm56 = vcmask 425344
    %57 = vst.msk [vmem:[#allocation0] sm:$0xf] %vm56, %v55
    %s58 = scalar_lea.vmem %s0, 11
    %s59 = smov 3
    %v60 = vld [vmem:[%s58] ss:$16 sm:%s59]
    %s61 = scalar_lea.vmem %s0, 11
    %s62 = smov 12
    %v63 = vld [vmem:[%s61] ss:$16 sm:%s62]
    %vm64 = vcmask 1043458
    %v65 = vsel %vm64, %v63, %v60
    %66 = vrot.lane.b32.xlu0 %v65, 44
    %v67 = vpop.permute.xlu0 %66
    %vm68 = vcmask 392544
    %69 = vst.msk [vmem:[#allocation0] sm:$0xf] %vm68, %v67
    %s70 = scalar_lea.vmem %s0, 10
    %s71 = smov 3
    %v72 = vld [vmem:[%s70] ss:$16 sm:%s71]
    %s73 = scalar_lea.vmem %s0, 10
    %s74 = smov 12
    %v75 = vld [vmem:[%s73] ss:$16 sm:%s74]
    %vm76 = vcmask 1043458
    %v77 = vsel %vm76, %v75, %v72
    %78 = vrot.lane.b32.xlu0 %v77, 40
    %v79 = vpop.permute.xlu0 %78
    %vm80 = vcmask 359744
    %81 = vst.msk [vmem:[#allocation0] sm:$0xf] %vm80, %v79
    %s82 = scalar_lea.vmem %s0, 9
    %s83 = smov 3
    %v84 = vld [vmem:[%s82] ss:$16 sm:%s83]
    %s85 = scalar_lea.vmem %s0, 9
    %s86 = smov 12
    %v87 = vld [vmem:[%s85] ss:$16 sm:%s86]
    %vm88 = vcmask 1043458
    %v89 = vsel %vm88, %v87, %v84
    %90 = vrot.lane.b32.xlu0 %v89, 36
    %v91 = vpop.permute.xlu0 %90
    %vm92 = vcmask 326944
    %93 = vst.msk [vmem:[#allocation0] sm:$0xf] %vm92, %v91
    %s94 = scalar_lea.vmem %s0, 8
    %s95 = smov 3
    %v96 = vld [vmem:[%s94] ss:$16 sm:%s95]
    %s97 = scalar_lea.vmem %s0, 8
    %s98 = smov 12
    %v99 = vld [vmem:[%s97] ss:$16 sm:%s98]
    %vm100 = vcmask 1043458
    %v101 = vsel %vm100, %v99, %v96
    %102 = vrot.lane.b32.xlu0 %v101, 32
    %v103 = vpop.permute.xlu0 %102
    %vm104 = vcmask 294144
    %105 = vst.msk [vmem:[#allocation0] sm:$0xf] %vm104, %v103
    %s106 = scalar_lea.vmem %s0, 7
    %s107 = smov 3
    %v108 = vld [vmem:[%s106] ss:$16 sm:%s107]
    %s109 = scalar_lea.vmem %s0, 7
    %s110 = smov 12
    %v111 = vld [vmem:[%s109] ss:$16 sm:%s110]
    %vm112 = vcmask 1043458
    %v113 = vsel %vm112, %v111, %v108
    %114 = vrot.lane.b32.xlu0 %v113, 28
    %v115 = vpop.permute.xlu0 %114
    %vm116 = vcmask 261344
    %117 = vst.msk [vmem:[#allocation0] sm:$0xf] %vm116, %v115
    %s118 = scalar_lea.vmem %s0, 6
    %s119 = smov 3
    %v120 = vld [vmem:[%s118] ss:$16 sm:%s119]
    %s121 = scalar_lea.vmem %s0, 6
    %s122 = smov 12
    %v123 = vld [vmem:[%s121] ss:$16 sm:%s122]
    %vm124 = vcmask 1043458
    %v125 = vsel %vm124, %v123, %v120
    %126 = vrot.lane.b32.xlu0 %v125, 24
    %v127 = vpop.permute.xlu0 %126
    %vm128 = vcmask 228544
    %129 = vst.msk [vmem:[#allocation0] sm:$0xf] %vm128, %v127
    %s130 = scalar_lea.vmem %s0, 5
    %s131 = smov 3
    %v132 = vld [vmem:[%s130] ss:$16 sm:%s131]
    %s133 = scalar_lea.vmem %s0, 5
    %s134 = smov 12
    %v135 = vld [vmem:[%s133] ss:$16 sm:%s134]
    %vm136 = vcmask 1043458
    %v137 = vsel %vm136, %v135, %v132
    %138 = vrot.lane.b32.xlu0 %v137, 20
    %v139 = vpop.permute.xlu0 %138
    %vm140 = vcmask 195744
    %141 = vst.msk [vmem:[#allocation0] sm:$0xf] %vm140, %v139
    %s142 = scalar_lea.vmem %s0, 4
    %s143 = smov 3
    %v144 = vld [vmem:[%s142] ss:$16 sm:%s143]
    %s145 = scalar_lea.vmem %s0, 4
    %s146 = smov 12
    %v147 = vld [vmem:[%s145] ss:$16 sm:%s146]
    %vm148 = vcmask 1043458
    %v149 = vsel %vm148, %v147, %v144
    %150 = vrot.lane.b32.xlu0 %v149, 16
    %v151 = vpop.permute.xlu0 %150
    %vm152 = vcmask 162944
    %153 = vst.msk [vmem:[#allocation0] sm:$0xf] %vm152, %v151
    %s154 = scalar_lea.vmem %s0, 3
    %s155 = smov 3
    %v156 = vld [vmem:[%s154] ss:$16 sm:%s155]
    %s157 = scalar_lea.vmem %s0, 3
    %s158 = smov 12
    %v159 = vld [vmem:[%s157] ss:$16 sm:%s158]
    %vm160 = vcmask 1043458
    %v161 = vsel %vm160, %v159, %v156
    %162 = vrot.lane.b32.xlu0 %v161, 12
    %v163 = vpop.permute.xlu0 %162
    %vm164 = vcmask 130144
    %165 = vst.msk [vmem:[#allocation0] sm:$0xf] %vm164, %v163
    %s166 = scalar_lea.vmem %s0, 2
    %s167 = smov 3
    %v168 = vld [vmem:[%s166] ss:$16 sm:%s167]
    %s169 = scalar_lea.vmem %s0, 2
    %s170 = smov 12
    %v171 = vld [vmem:[%s169] ss:$16 sm:%s170]
    %vm172 = vcmask 1043458
    %v173 = vsel %vm172, %v171, %v168
    %174 = vrot.lane.b32.xlu0 %v173, 8
    %v175 = vpop.permute.xlu0 %174
    %vm176 = vcmask 97344
    %177 = vst.msk [vmem:[#allocation0] sm:$0xf] %vm176, %v175
    %s178 = scalar_lea.vmem %s0, 1
    %s179 = smov 3
    %v180 = vld [vmem:[%s178] ss:$16 sm:%s179]
    %s181 = scalar_lea.vmem %s0, 1
    %s182 = smov 12
    %v183 = vld [vmem:[%s181] ss:$16 sm:%s182]
    %vm184 = vcmask 1043458
    %v185 = vsel %vm184, %v183, %v180
    %186 = vrot.lane.b32.xlu0 %v185, 4
    %v187 = vpop.permute.xlu0 %186
    %vm188 = vcmask 64544
    %189 = vst.msk [vmem:[#allocation0] sm:$0xf] %vm188, %v187
    %s191 = ssub.s32 16, 1
    %v192 = vld [vmem:[#allocation0] sm:%s191]
    %s194 = ssub.s32 16, 1
    %195 = vst [vmem:[%s1] sm:%s194] %v192

// kernel: tile.38
$region0: #{tile.38}
  #allocation0 [shape = 's32[1]{0}', space=sflag, size = 0x4, scoped, tag = 'scoped memory for tile.38']
  %s0 = inlined_call_operand.vmem [shape: f32[8], index: 0, kind: input, shape index: {}]
  %s1 = inlined_call_operand.vmem [shape: f32[16,8], index: 1, kind: output, shape index: {}]
  // Predicated region
  $region2: #{tile.38} parent=0 // pred_check
    _
  $region3: #{tile.38} parent=0 // pred_check_branch
    %3 = sbr.rel (0) target = $region5
  $region4: #{tile.38} parent=0 // pred_region
    _
  $region5: #{tile.38} parent=0 // pred_fallthru
    _
  %v4 = vld [vmem:[%s0] ss:$0 sm:$0xff]
  %5 = vst [vmem:[%s1] sm:$0xff] %v4
  %s6 = scalar_lea.vmem %s1, 8
  %7 = vst [vmem:[%s6] sm:$0xff] %v4

// kernel: tile.39
$region0: #{tile.39}
  %s0 = inlined_call_operand.vmem [shape: f32[16,8], index: 0, kind: input, shape index: {}]
  %s1 = inlined_call_operand.vmem [shape: f32[1,128], index: 1, kind: output, shape index: {}]
  $region1: #{tile.39} parent=0
    #allocation0 [shape = 'u8[4096]{0}', space=vmem, size = 0x1000, scoped, tag = 'scoped mem for output reshape']
    %v2 = vld [vmem:[%s0] sm:$0x1]
    %vm3 = vcmask 64512
    %4 = vst.msk [vmem:[#allocation0] sm:$0x1] %vm3, %v2
    %s5 = scalar_lea.vmem %s0, 15
    %v6 = vld [vmem:[%s5] sm:$0x1]
    %7 = vrot.lane.b32.xlu0 %v6, 120
    %v8 = vpop.permute.xlu0 %7
    %vm9 = vcmask 1048512
    %10 = vst.msk [vmem:[#allocation0] sm:$0x1] %vm9, %v8
    %s11 = scalar_lea.vmem %s0, 14
    %v12 = vld [vmem:[%s11] sm:$0x1]
    %13 = vrot.lane.b32.xlu0 %v12, 112
    %v14 = vpop.permute.xlu0 %13
    %vm15 = vcmask 982912
    %16 = vst.msk [vmem:[#allocation0] sm:$0x1] %vm15, %v14
    %s17 = scalar_lea.vmem %s0, 13
    %v18 = vld [vmem:[%s17] sm:$0x1]
    %19 = vrot.lane.b32.xlu0 %v18, 104
    %v20 = vpop.permute.xlu0 %19
    %vm21 = vcmask 917312
    %22 = vst.msk [vmem:[#allocation0] sm:$0x1] %vm21, %v20
    %s23 = scalar_lea.vmem %s0, 12
    %v24 = vld [vmem:[%s23] sm:$0x1]
    %25 = vrot.lane.b32.xlu0 %v24, 96
    %v26 = vpop.permute.xlu0 %25
    %vm27 = vcmask 851712
    %28 = vst.msk [vmem:[#allocation0] sm:$0x1] %vm27, %v26
    %s29 = scalar_lea.vmem %s0, 11
    %v30 = vld [vmem:[%s29] sm:$0x1]
    %31 = vrot.lane.b32.xlu0 %v30, 88
    %v32 = vpop.permute.xlu0 %31
    %vm33 = vcmask 786112
    %34 = vst.msk [vmem:[#allocation0] sm:$0x1] %vm33, %v32
    %s35 = scalar_lea.vmem %s0, 10
    %v36 = vld [vmem:[%s35] sm:$0x1]
    %37 = vrot.lane.b32.xlu0 %v36, 80
    %v38 = vpop.permute.xlu0 %37
    %vm39 = vcmask 720512
    %40 = vst.msk [vmem:[#allocation0] sm:$0x1] %vm39, %v38
    %s41 = scalar_lea.vmem %s0, 9
    %v42 = vld [vmem:[%s41] sm:$0x1]
    %43 = vrot.lane.b32.xlu0 %v42, 72
    %v44 = vpop.permute.xlu0 %43
    %vm45 = vcmask 654912
    %46 = vst.msk [vmem:[#allocation0] sm:$0x1] %vm45, %v44
    %s47 = scalar_lea.vmem %s0, 8
    %v48 = vld [vmem:[%s47] sm:$0x1]
    %49 = vrot.lane.b32.xlu0 %v48, 64
    %v50 = vpop.permute.xlu0 %49
    %vm51 = vcmask 589312
    %52 = vst.msk [vmem:[#allocation0] sm:$0x1] %vm51, %v50
    %s53 = scalar_lea.vmem %s0, 7
    %v54 = vld [vmem:[%s53] sm:$0x1]
    %55 = vrot.lane.b32.xlu0 %v54, 56
    %v56 = vpop.permute.xlu0 %55
    %vm57 = vcmask 523712
    %58 = vst.msk [vmem:[#allocation0] sm:$0x1] %vm57, %v56
    %s59 = scalar_lea.vmem %s0, 6
    %v60 = vld [vmem:[%s59] sm:$0x1]
    %61 = vrot.lane.b32.xlu0 %v60, 48
    %v62 = vpop.permute.xlu0 %61
    %vm63 = vcmask 458112
    %64 = vst.msk [vmem:[#allocation0] sm:$0x1] %vm63, %v62
    %s65 = scalar_lea.vmem %s0, 5
    %v66 = vld [vmem:[%s65] sm:$0x1]
    %67 = vrot.lane.b32.xlu0 %v66, 40
    %v68 = vpop.permute.xlu0 %67
    %vm69 = vcmask 392512
    %70 = vst.msk [vmem:[#allocation0] sm:$0x1] %vm69, %v68
    %s71 = scalar_lea.vmem %s0, 4
    %v72 = vld [vmem:[%s71] sm:$0x1]
    %73 = vrot.lane.b32.xlu0 %v72, 32
    %v74 = vpop.permute.xlu0 %73
    %vm75 = vcmask 326912
    %76 = vst.msk [vmem:[#allocation0] sm:$0x1] %vm75, %v74
    %s77 = scalar_lea.vmem %s0, 3
    %v78 = vld [vmem:[%s77] sm:$0x1]
    %79 = vrot.lane.b32.xlu0 %v78, 24
    %v80 = vpop.permute.xlu0 %79
    %vm81 = vcmask 261312
    %82 = vst.msk [vmem:[#allocation0] sm:$0x1] %vm81, %v80
    %s83 = scalar_lea.vmem %s0, 2
    %v84 = vld [vmem:[%s83] sm:$0x1]
    %85 = vrot.lane.b32.xlu0 %v84, 16
    %v86 = vpop.permute.xlu0 %85
    %vm87 = vcmask 195712
    %88 = vst.msk [vmem:[#allocation0] sm:$0x1] %vm87, %v86
    %s89 = scalar_lea.vmem %s0, 1
    %v90 = vld [vmem:[%s89] sm:$0x1]
    %91 = vrot.lane.b32.xlu0 %v90, 8
    %v92 = vpop.permute.xlu0 %91
    %vm93 = vcmask 130112
    %94 = vst.msk [vmem:[#allocation0] sm:$0x1] %vm93, %v92
    %s96 = ssub.s32 2, 1
    %v97 = vld [vmem:[#allocation0] sm:%s96]
    %s99 = ssub.s32 2, 1
    %100 = vst [vmem:[%s1] sm:%s99] %v97

// kernel: down_layer_forward.1
$region0: #{down_layer_forward.1}
  #allocation0 [shape = 'u32[]', space=smem, size = 0x4, offset = 0x4, fixed_abs, tag = 'smem constant byte address 0x4 - core index']
  #allocation1 [shape = 'u32[72,128]{1,0:T(1,128)}', space=vmem, size = 0x9000, scoped, tag = 'internal scratch']
  %s0 = inlined_call_operand.vmem [shape: f32[32,64], index: 0, kind: input, shape index: {}]
  %s1 = inlined_call_operand.vmem [shape: f32[64,4], index: 1, kind: input, shape index: {}]
  %s2 = inlined_call_operand.vmem [shape: f32[4,64], index: 2, kind: input, shape index: {}]
  %s3 = inlined_call_operand.vmem [shape: f32[128,8], index: 3, kind: input, shape index: {}]
  %s4 = inlined_call_operand.vmem [shape: f32[8,128], index: 4, kind: input, shape index: {}]
  %s5 = inlined_call_operand.vmem [shape: f32[1,4], index: 5, kind: input, shape index: {}]
  %s6 = inlined_call_operand.vmem [shape: f32[1,4], index: 6, kind: input, shape index: {}]
  %s7 = inlined_call_operand.vmem [shape: f32[192,128], index: 7, kind: input, shape index: {}]
  %s8 = inlined_call_operand.vmem [shape: f32[1,128], index: 8, kind: input, shape index: {}]
  %s9 = inlined_call_operand.vmem [shape: f32[1,8], index: 9, kind: input, shape index: {}]
  %s10 = inlined_call_operand.vmem [shape: f32[1,8], index: 10, kind: input, shape index: {}]
  %s11 = inlined_call_operand.vmem [shape: f32[384,128], index: 11, kind: input, shape index: {}]
  %s12 = inlined_call_operand.vmem [shape: f32[1,128], index: 12, kind: input, shape index: {}]
  %s13 = inlined_call_operand.vmem [shape: f32[1,8], index: 13, kind: input, shape index: {}]
  %s14 = inlined_call_operand.vmem [shape: f32[1,8], index: 14, kind: input, shape index: {}]
  %s15 = inlined_call_operand.vmem [shape: f32[384,128], index: 15, kind: input, shape index: {}]
  %s16 = inlined_call_operand.vmem [shape: f32[1,128], index: 16, kind: input, shape index: {}]
  %s17 = inlined_call_operand.vmem [shape: f32[16,128], index: 17, kind: output, shape index: {}]
  %s18 = sld [smem:[#allocation0]]
  $region78: #{down_layer_forward.1} parent=0
    _
  %s20 = ssub.s32 1, %s18
  %s21 = scalar_select 0, %s20, %s18
  // Predicated region
  $region2: #{down_layer_forward.1} parent=0 // pred_check
    _
  $region3: #{down_layer_forward.1} parent=0 // pred_check_branch
    %23 = sbr.rel (0) target = $region5
  $region4: #{down_layer_forward.1} parent=0 // pred_region
    _
  $region5: #{down_layer_forward.1} parent=0 // pred_fallthru
    _
  // Predicated region
  $region6: #{down_layer_forward.1} parent=0 // pred_check
    _
  $region7: #{down_layer_forward.1} parent=0 // pred_check_branch
    %25 = sbr.rel (0) target = $region9
  $region8: #{down_layer_forward.1} parent=0 // pred_region
    _
  $region9: #{down_layer_forward.1} parent=0 // pred_fallthru
    _
  // Predicated region
  $region10: #{down_layer_forward.1} parent=0 // pred_check
    _
  $region11: #{down_layer_forward.1} parent=0 // pred_check_branch
    %27 = sbr.rel (0) target = $region13
  $region12: #{down_layer_forward.1} parent=0 // pred_region
    _
  $region13: #{down_layer_forward.1} parent=0 // pred_fallthru
    _
  // Predicated region
  $region14: #{down_layer_forward.1} parent=0 // pred_check
    _
  $region15: #{down_layer_forward.1} parent=0 // pred_check_branch
    %29 = sbr.rel (0) target = $region17
  $region16: #{down_layer_forward.1} parent=0 // pred_region
    _
  $region17: #{down_layer_forward.1} parent=0 // pred_fallthru
    _
  // Predicated region
  $region18: #{down_layer_forward.1} parent=0 // pred_check
    _
  $region19: #{down_layer_forward.1} parent=0 // pred_check_branch
    %31 = sbr.rel (0) target = $region21
  $region20: #{down_layer_forward.1} parent=0 // pred_region
    _
  $region21: #{down_layer_forward.1} parent=0 // pred_fallthru
    _
  // Predicated region
  $region22: #{down_layer_forward.1} parent=0 // pred_check
    _
  $region23: #{down_layer_forward.1} parent=0 // pred_check_branch
    %33 = sbr.rel (0) target = $region25
  $region24: #{down_layer_forward.1} parent=0 // pred_region
    _
  $region25: #{down_layer_forward.1} parent=0 // pred_fallthru
    _
  // Predicated region
  $region26: #{down_layer_forward.1} parent=0 // pred_check
    _
  $region27: #{down_layer_forward.1} parent=0 // pred_check_branch
    %35 = sbr.rel (0) target = $region29
  $region28: #{down_layer_forward.1} parent=0 // pred_region
    _
  $region29: #{down_layer_forward.1} parent=0 // pred_fallthru
    _
  // Predicated region
  $region30: #{down_layer_forward.1} parent=0 // pred_check
    _
  $region31: #{down_layer_forward.1} parent=0 // pred_check_branch
    %37 = sbr.rel (0) target = $region33
  $region32: #{down_layer_forward.1} parent=0 // pred_region
    _
  $region33: #{down_layer_forward.1} parent=0 // pred_fallthru
    _
  // Predicated region
  $region34: #{down_layer_forward.1} parent=0 // pred_check
    _
  $region35: #{down_layer_forward.1} parent=0 // pred_check_branch
    %39 = sbr.rel (0) target = $region37
  $region36: #{down_layer_forward.1} parent=0 // pred_region
    _
  $region37: #{down_layer_forward.1} parent=0 // pred_fallthru
    _
  // Predicated region
  $region38: #{down_layer_forward.1} parent=0 // pred_check
    _
  $region39: #{down_layer_forward.1} parent=0 // pred_check_branch
    %41 = sbr.rel (0) target = $region41
  $region40: #{down_layer_forward.1} parent=0 // pred_region
    _
  $region41: #{down_layer_forward.1} parent=0 // pred_fallthru
    _
  // Predicated region
  $region42: #{down_layer_forward.1} parent=0 // pred_check
    _
  $region43: #{down_layer_forward.1} parent=0 // pred_check_branch
    %43 = sbr.rel (0) target = $region45
  $region44: #{down_layer_forward.1} parent=0 // pred_region
    _
  $region45: #{down_layer_forward.1} parent=0 // pred_fallthru
    _
  // Predicated region
  $region46: #{down_layer_forward.1} parent=0 // pred_check
    _
  $region47: #{down_layer_forward.1} parent=0 // pred_check_branch
    %45 = sbr.rel (0) target = $region49
  $region48: #{down_layer_forward.1} parent=0 // pred_region
    _
  $region49: #{down_layer_forward.1} parent=0 // pred_fallthru
    _
  // Predicated region
  $region50: #{down_layer_forward.1} parent=0 // pred_check
    _
  $region51: #{down_layer_forward.1} parent=0 // pred_check_branch
    %47 = sbr.rel (0) target = $region53
  $region52: #{down_layer_forward.1} parent=0 // pred_region
    _
  $region53: #{down_layer_forward.1} parent=0 // pred_fallthru
    _
  // Predicated region
  $region54: #{down_layer_forward.1} parent=0 // pred_check
    _
  $region55: #{down_layer_forward.1} parent=0 // pred_check_branch
    %49 = sbr.rel (0) target = $region57
  $region56: #{down_layer_forward.1} parent=0 // pred_region
    _
  $region57: #{down_layer_forward.1} parent=0 // pred_fallthru
    _
  // Predicated region
  $region58: #{down_layer_forward.1} parent=0 // pred_check
    _
  $region59: #{down_layer_forward.1} parent=0 // pred_check_branch
    %51 = sbr.rel (0) target = $region61
  $region60: #{down_layer_forward.1} parent=0 // pred_region
    _
  $region61: #{down_layer_forward.1} parent=0 // pred_fallthru
    _
  // Predicated region
  $region62: #{down_layer_forward.1} parent=0 // pred_check
    _
  $region63: #{down_layer_forward.1} parent=0 // pred_check_branch
    %53 = sbr.rel (0) target = $region65
  $region64: #{down_layer_forward.1} parent=0 // pred_region
    _
  $region65: #{down_layer_forward.1} parent=0 // pred_fallthru
    _
  // Predicated region
  $region66: #{down_layer_forward.1} parent=0 // pred_check
    _
  $region67: #{down_layer_forward.1} parent=0 // pred_check_branch
    %55 = sbr.rel (0) target = $region69
  $region68: #{down_layer_forward.1} parent=0 // pred_region
    _
  $region69: #{down_layer_forward.1} parent=0 // pred_fallthru
    _
  %v56 = vlaneseq
  %v57 = vshrl.u32 %v56, 7
  %v58 = vadd.s32 %v57, 8
  %v59 = vadd.s32 %v57, 16
  %v60 = vadd.s32 %v57, 24
  %vm61 = vcmp.lt.s32.totalorder %v57, 0
  %v62 = vsub.s32 0, %v57
  %v63 = vsel %vm61, %v62, %v57
  %v64 = vshrl.u32 %v63, 4
  %v65 = vand.u32 %v63, 15
  %v66 = vsub.s32 0, %v65
  %v67 = vsel %vm61, %v66, %v65
  %vm68 = vcmp.lt.s32.totalorder %v58, 0
  %v69 = vsub.s32 0, %v58
  %v70 = vsel %vm68, %v69, %v58
  %v71 = vshrl.u32 %v70, 4
  %v72 = vand.u32 %v70, 15
  %v73 = vsub.s32 0, %v72
  %v74 = vsel %vm68, %v73, %v72
  %vm75 = vcmp.lt.s32.totalorder %v59, 0
  %v76 = vsub.s32 0, %v59
  %v77 = vsel %vm75, %v76, %v59
  %v78 = vshrl.u32 %v77, 4
  %v79 = vand.u32 %v77, 15
  %v80 = vsub.s32 0, %v79
  %v81 = vsel %vm75, %v80, %v79
  %vm82 = vcmp.lt.s32.totalorder %v60, 0
  %v83 = vsub.s32 0, %v60
  %v84 = vsel %vm82, %v83, %v60
  %v85 = vshrl.u32 %v84, 4
  %v86 = vand.u32 %v84, 15
  %v87 = vsub.s32 0, %v86
  %v88 = vsel %vm82, %v87, %v86
  %vm89 = vcmp.ne.s32.totalorder %v67, 0
  %vm90 = vcmp.ne.s32.totalorder %v74, 0
  %vm91 = vcmp.ne.s32.totalorder %v81, 0
  %vm92 = vcmp.ne.s32.totalorder %v88, 0
  %vm93 = vcmp.lt.s32.totalorder %v67, 0
  %vm94 = vcmp.lt.s32.totalorder %v74, 0
  %vm95 = vcmp.lt.s32.totalorder %v81, 0
  %vm96 = vcmp.lt.s32.totalorder %v88, 0
  %vm97 = vmand %vm93, %vm89
  %vm98 = vmand %vm94, %vm90
  %vm99 = vmand %vm95, %vm91
  %vm100 = vmand %vm96, %vm92
  %v101 = vadd.s32 %v67, 16
  %v102 = vadd.s32 %v74, 16
  %v103 = vadd.s32 %v81, 16
  %v104 = vadd.s32 %v88, 16
  %v105 = vsel %vm97, %v101, %v67
  %v106 = vsel %vm98, %v102, %v74
  %v107 = vsel %vm99, %v103, %v81
  %v108 = vsel %vm100, %v104, %v88
  %v109 = vadd.s32 %v105, 4294967295
  %v110 = vadd.s32 %v106, 4294967295
  %v111 = vadd.s32 %v107, 4294967295
  %v112 = vadd.s32 %v108, 4294967295
  %vm113 = vcmp.ge.s32.totalorder %v109, 0
  %vm114 = vcmp.ge.s32.totalorder %v110, 0
  %vm115 = vcmp.ge.s32.totalorder %v111, 0
  %vm116 = vcmp.ge.s32.totalorder %v112, 0
  %vm117 = vcmp.lt.s32.totalorder %v109, 16
  %vm118 = vcmp.lt.s32.totalorder %v110, 16
  %vm119 = vcmp.lt.s32.totalorder %v111, 16
  %vm120 = vcmp.lt.s32.totalorder %v112, 16
  %vm121 = vmand %vm113, %vm117
  %vm122 = vmand %vm114, %vm118
  %vm123 = vmand %vm115, %vm119
  %vm124 = vmand %vm116, %vm120
  %v125 = vadd.s32 %v105, 1
  %v126 = vadd.s32 %v106, 1
  %v127 = vadd.s32 %v107, 1
  %v128 = vadd.s32 %v108, 1
  %vm129 = vcmp.ge.s32.totalorder %v125, 0
  %vm130 = vcmp.ge.s32.totalorder %v126, 0
  %vm131 = vcmp.ge.s32.totalorder %v127, 0
  %vm132 = vcmp.ge.s32.totalorder %v128, 0
  %vm133 = vcmp.lt.s32.totalorder %v125, 16
  %vm134 = vcmp.lt.s32.totalorder %v126, 16
  %vm135 = vcmp.lt.s32.totalorder %v127, 16
  %vm136 = vcmp.lt.s32.totalorder %v128, 16
  %vm137 = vmand %vm129, %vm133
  %vm138 = vmand %vm130, %vm134
  %vm139 = vmand %vm131, %vm135
  %vm140 = vmand %vm132, %vm136
  %v141 = vld [vmem:[%s1] sm:$0xff]
  %v142 = vld [vmem:[%s1 + $0x8] sm:$0xff]
  %v143 = vld [vmem:[%s1 + $0x10] sm:$0xff]
  %v144 = vld [vmem:[%s1 + $0x18] sm:$0xff]
  %v145 = vld [vmem:[%s1 + $0x20] sm:$0xff]
  %v146 = vld [vmem:[%s1 + $0x28] sm:$0xff]
  %v147 = vld [vmem:[%s1 + $0x30] sm:$0xff]
  %v148 = vld [vmem:[%s1 + $0x38] sm:$0xff]
  %v149 = vld [vmem:[%s2] sm:$0xf]
  %v150 = vld [vmem:[%s3] sm:$0xff]
  %v151 = vld [vmem:[%s3 + $0x8] sm:$0xff]
  %v152 = vld [vmem:[%s3 + $0x10] sm:$0xff]
  %v153 = vld [vmem:[%s3 + $0x18] sm:$0xff]
  %v154 = vld [vmem:[%s3 + $0x20] sm:$0xff]
  %v155 = vld [vmem:[%s3 + $0x28] sm:$0xff]
  %v156 = vld [vmem:[%s3 + $0x30] sm:$0xff]
  %v157 = vld [vmem:[%s3 + $0x38] sm:$0xff]
  %v158 = vld [vmem:[%s3 + $0x40] sm:$0xff]
  %v159 = vld [vmem:[%s3 + $0x48] sm:$0xff]
  %v160 = vld [vmem:[%s3 + $0x50] sm:$0xff]
  %v161 = vld [vmem:[%s3 + $0x58] sm:$0xff]
  %v162 = vld [vmem:[%s3 + $0x60] sm:$0xff]
  %v163 = vld [vmem:[%s3 + $0x68] sm:$0xff]
  %v164 = vld [vmem:[%s3 + $0x70] sm:$0xff]
  %v165 = vld [vmem:[%s3 + $0x78] sm:$0xff]
  %v166 = vld [vmem:[%s4] sm:$0xff]
  %v167 = vld [vmem:[%s0] sm:$0xff]
  %v168 = vld [vmem:[%s0 + $0x8] sm:$0xff]
  %v169 = vld [vmem:[%s0 + $0x10] sm:$0xff]
  %v170 = vld [vmem:[%s0 + $0x18] sm:$0xff]
  %v171 = vld [vmem:[%s5] sm:$0x1]
  %v172 = vld [vmem:[%s6] sm:$0x1]
  %v173 = vld [vmem:[%s8] sm:$0x1]
  %vm174 = vcmask 523264
  %v175 = vsel %vm174, %v167, 0.0
  %v176 = vsel %vm174, %v168, 0.0
  %v177 = vadd.f32 %v175, %v176
  %v178 = vsel %vm174, %v169, 0.0
  %v179 = vadd.f32 %v177, %v178
  %v180 = vsel %vm174, %v170, 0.0
  %v181 = vadd.f32 %v179, %v180
  %v182 = vrot.slane %v181, 4
  %v183 = vadd.f32 %v181, %v182
  %v184 = vrot.slane %v183, 2
  %v185 = vadd.f32 %v183, %v184
  %v186 = vrot.slane %v185, 1
  %v187 = vadd.f32 %v185, %v186
  %v189 = vsel %vm174, %v187, 0
  %191 = vmatpush.msra.mxu0 0.0
  %192 = vmatpush.msra.mxu0 0.0
  %193 = vmatpush.msra.mxu0 0.0
  %194 = vmatpush.msra.mxu0 0.0
  %195 = vmatpush.msra.mxu0 0.0
  %196 = vmatpush.msra.mxu0 0.0
  %197 = vmatpush.msra.mxu0 0.0
  %198 = vmatpush.msra.mxu0 0.0
  %199 = vmatpush.msra.mxu0 %v148
  %200 = vmatpush.msra.mxu0 %v147
  %201 = vmatpush.msra.mxu0 %v146
  %202 = vmatpush.msra.mxu0 %v145
  %203 = vmatpush.msra.mxu0 %v144
  %204 = vmatpush.msra.mxu0 %v143
  %205 = vmatpush.msra.mxu0 %v142
  %206 = vmatpush.msra.mxu0 %v141
  %207 = vmatmul.f32.gmra.mxu0 %v189
  %v208 = vpop.f32.mrf.mxu0
  %v209 = vadd.f32 0.0, %v208
  %210 = vdwg.mxu0
  %v211 = vmul.f32 %v209, 0.001953125
  %vm212 = vcmask 31744
  %v214 = vsel %vm212, %v211, 0
  %vm216 = vcmask 1043456
  %v218 = vsel %vm216, %v149, 0
  %220 = vmatpush.msra.mxu0 0.0
  %221 = vmatpush.msra.mxu0 0.0
  %222 = vmatpush.msra.mxu0 0.0
  %223 = vmatpush.msra.mxu0 0.0
  %224 = vmatpush.msra.mxu0 0.0
  %225 = vmatpush.msra.mxu0 0.0
  %226 = vmatpush.msra.mxu0 0.0
  %227 = vmatpush.msra.mxu0 0.0
  %228 = vmatpush.msra.mxu0 0.0
  %229 = vmatpush.msra.mxu0 0.0
  %230 = vmatpush.msra.mxu0 0.0
  %231 = vmatpush.msra.mxu0 0.0
  %232 = vmatpush.msra.mxu0 0.0
  %233 = vmatpush.msra.mxu0 0.0
  %234 = vmatpush.msra.mxu0 0.0
  %235 = vmatpush.msra.mxu0 %v218
  %236 = vmatmul.f32.gmra.mxu0 %v214
  %v237 = vpop.f32.mrf.mxu0
  %v238 = vadd.f32 0.0, %v237
  %239 = vdwg.mxu0
  %v240 = vperm.slane %v238, 0
  %v241 = vsub.f32 %v167, %v240
  %v242 = vsub.f32 %v168, %v240
  %v243 = vsub.f32 %v169, %v240
  %v244 = vsub.f32 %v170, %v240
  %v245 = vmul.f32 %v241, %v241
  %v246 = vmul.f32 %v242, %v242
  %v247 = vmul.f32 %v243, %v243
  %v248 = vmul.f32 %v244, %v244
  %v249 = vsel %vm174, %v245, 0.0
  %v250 = vsel %vm174, %v246, 0.0
  %v251 = vadd.f32 %v249, %v250
  %v252 = vsel %vm174, %v247, 0.0
  %v253 = vadd.f32 %v251, %v252
  %v254 = vsel %vm174, %v248, 0.0
  %v255 = vadd.f32 %v253, %v254
  %v256 = vrot.slane %v255, 4
  %v257 = vadd.f32 %v255, %v256
  %v258 = vrot.slane %v257, 2
  %v259 = vadd.f32 %v257, %v258
  %v260 = vrot.slane %v259, 1
  %v261 = vadd.f32 %v259, %v260
  %v263 = vsel %vm174, %v261, 0
  %265 = vmatpush.msra.mxu0 0.0
  %266 = vmatpush.msra.mxu0 0.0
  %267 = vmatpush.msra.mxu0 0.0
  %268 = vmatpush.msra.mxu0 0.0
  %269 = vmatpush.msra.mxu0 0.0
  %270 = vmatpush.msra.mxu0 0.0
  %271 = vmatpush.msra.mxu0 0.0
  %272 = vmatpush.msra.mxu0 0.0
  %273 = vmatpush.msra.mxu0 %v148
  %274 = vmatpush.msra.mxu0 %v147
  %275 = vmatpush.msra.mxu0 %v146
  %276 = vmatpush.msra.mxu0 %v145
  %277 = vmatpush.msra.mxu0 %v144
  %278 = vmatpush.msra.mxu0 %v143
  %279 = vmatpush.msra.mxu0 %v142
  %280 = vmatpush.msra.mxu0 %v141
  %281 = vmatmul.f32.gmra.mxu0 %v263
  %v282 = vpop.f32.mrf.mxu0
  %v283 = vadd.f32 0.0, %v282
  %284 = vdwg.mxu0
  %v285 = vmul.f32 %v283, 0.001953125
  %v286 = vadd.f32 %v285, 1e-05
  %v287 = vrsqrt.pop %v286
  %v288 = vmul.f32 %v287, %v286
  %v289 = vmul.f32 %v288, %v287
  %v290 = vmul.f32 0.5, %v289
  %v291 = vsub.f32 1.5, %v290
  %v292 = vmul.f32 %v287, %v291
  %vm293 = vweird.f32 %v286
  %vm294 = vweird.f32 %v287
  %vm295 = vmor %vm293, %vm294
  %v296 = vsel %vm295, %v287, %v292
  %v297 = vmul.f32 %v171, %v296
  %v299 = vperm.slane %v172, 0
  %vm301 = vcmask 1040384
  %v302 = vsel %vm301, %v297, %v299
  %v304 = vsel %vm212, %v302, 0
  %306 = vmatpush.msra.mxu0 0.0
  %307 = vmatpush.msra.mxu0 0.0
  %308 = vmatpush.msra.mxu0 0.0
  %309 = vmatpush.msra.mxu0 0.0
  %310 = vmatpush.msra.mxu0 0.0
  %311 = vmatpush.msra.mxu0 0.0
  %312 = vmatpush.msra.mxu0 0.0
  %313 = vmatpush.msra.mxu0 0.0
  %314 = vmatpush.msra.mxu0 0.0
  %315 = vmatpush.msra.mxu0 0.0
  %316 = vmatpush.msra.mxu0 0.0
  %317 = vmatpush.msra.mxu0 0.0
  %318 = vmatpush.msra.mxu0 0.0
  %319 = vmatpush.msra.mxu0 0.0
  %320 = vmatpush.msra.mxu0 0.0
  %321 = vmatpush.msra.mxu0 %v218
  %322 = vmatmul.f32.gmra.mxu0 %v304
  %v323 = vpop.f32.mrf.mxu0
  %v324 = vadd.f32 0.0, %v323
  %325 = vdwg.mxu0
  %v326 = vperm.slane %v324, 0
  %v327 = vmul.f32 %v241, %v326
  %v328 = vmul.f32 %v242, %v326
  %v329 = vmul.f32 %v243, %v326
  %v330 = vmul.f32 %v244, %v326
  %v331 = vperm.slane %v324, 1
  %v332 = vadd.f32 %v327, %v331
  %v333 = vadd.f32 %v328, %v331
  %v334 = vadd.f32 %v329, %v331
  %v335 = vadd.f32 %v330, %v331
  %vm336 = vcmp.gt.f32.partialorder %v332, 0.0
  %vm337 = vcmp.gt.f32.partialorder %v333, 0.0
  %vm338 = vcmp.gt.f32.partialorder %v334, 0.0
  %vm339 = vcmp.gt.f32.partialorder %v335, 0.0
  %v340 = vmul.f32 %v332, 1.442695
  %v341 = vpow.pop %v340
  %v342 = vmul.f32 %v333, 1.442695
  %v343 = vpow.pop %v342
  %v344 = vmul.f32 %v334, 1.442695
  %v345 = vpow.pop %v344
  %v346 = vmul.f32 %v335, 1.442695
  %v347 = vpow.pop %v346
  %v348 = vsub.f32 %v341, 1.0
  %v349 = vsub.f32 %v343, 1.0
  %v350 = vsub.f32 %v345, 1.0
  %v351 = vsub.f32 %v347, 1.0
  %v352 = vmul.f32 %v348, 1.6732632
  %v353 = vmul.f32 %v349, 1.6732632
  %v354 = vmul.f32 %v350, 1.6732632
  %v355 = vmul.f32 %v351, 1.6732632
  %v356 = vsel %vm336, %v332, %v352
  %v357 = vsel %vm337, %v333, %v353
  %v358 = vsel %vm338, %v334, %v354
  %v359 = vsel %vm339, %v335, %v355
  %v360 = vmul.f32 %v356, 1.050701
  %v361 = vmul.f32 %v357, 1.050701
  %v362 = vmul.f32 %v358, 1.050701
  %v363 = vmul.f32 %v359, 1.050701
  %v364 = vrot.slane %v360, 7
  %v365 = vrot.slane %v361, 7
  %v366 = vrot.slane %v362, 7
  %v367 = vrot.slane %v363, 7
  %vm368 = vcmp.lt.s32.totalorder %v57, 1
  %v369 = vsel %vm368, %v366, %v367
  %v370 = vsel %vm368, %v365, %v366
  %v371 = vsel %vm368, %v364, %v365
  %v372 = vsel %vm368, %v367, %v364
  %v373 = vsel %vm121, 1, 0
  %v374 = vsel %vm122, 1, 0
  %v375 = vsel %vm123, 1, 0
  %v376 = vsel %vm124, 1, 0
  %vm377 = vcmp.eq.s32.totalorder %v373, 1
  %vm378 = vcmp.eq.s32.totalorder %v374, 1
  %vm379 = vcmp.eq.s32.totalorder %v375, 1
  %vm380 = vcmp.eq.s32.totalorder %v376, 1
  %v381 = vsel %vm377, %v372, 0.0
  %v382 = vsel %vm378, %v371, 0.0
  %v383 = vsel %vm379, %v370, 0.0
  %v384 = vsel %vm380, %v369, 0.0
  %v385 = vld [vmem:[%s7] sm:$0xff]
  %v386 = vld [vmem:[%s7 + $0x8] sm:$0xff]
  %v387 = vld [vmem:[%s7 + $0x10] sm:$0xff]
  %v388 = vld [vmem:[%s7 + $0x18] sm:$0xff]
  %v389 = vld [vmem:[%s7 + $0x20] sm:$0xff]
  %v390 = vld [vmem:[%s7 + $0x28] sm:$0xff]
  %v391 = vld [vmem:[%s7 + $0x30] sm:$0xff]
  %v392 = vld [vmem:[%s7 + $0x38] sm:$0xff]
  %v393 = vld [vmem:[%s7 + $0x40] sm:$0xff]
  %v394 = vld [vmem:[%s7 + $0x48] sm:$0xff]
  %v395 = vld [vmem:[%s7 + $0x50] sm:$0xff]
  %v396 = vld [vmem:[%s7 + $0x58] sm:$0xff]
  %v397 = vld [vmem:[%s7 + $0x60] sm:$0xff]
  %v398 = vld [vmem:[%s7 + $0x68] sm:$0xff]
  %v399 = vld [vmem:[%s7 + $0x70] sm:$0xff]
  %v400 = vld [vmem:[%s7 + $0x78] sm:$0xff]
  %v402 = vsel %vm174, %v360, 0
  %v405 = vsel %vm174, %v361, 0
  %v408 = vsel %vm174, %v362, 0
  %v411 = vsel %vm174, %v363, 0
  %413 = vmatpush.msra.mxu0 0.0
  %414 = vmatpush.msra.mxu0 0.0
  %415 = vmatpush.msra.mxu0 0.0
  %416 = vmatpush.msra.mxu0 0.0
  %417 = vmatpush.msra.mxu0 0.0
  %418 = vmatpush.msra.mxu0 0.0
  %419 = vmatpush.msra.mxu0 0.0
  %420 = vmatpush.msra.mxu0 0.0
  %421 = vmatpush.msra.mxu0 %v400
  %422 = vmatpush.msra.mxu0 %v399
  %423 = vmatpush.msra.mxu0 %v398
  %424 = vmatpush.msra.mxu0 %v397
  %425 = vmatpush.msra.mxu0 %v396
  %426 = vmatpush.msra.mxu0 %v395
  %427 = vmatpush.msra.mxu0 %v394
  %428 = vmatpush.msra.mxu0 %v393
  %429 = vmatmul.f32.gmra.mxu0 %v402
  %v430 = vpop.f32.mrf.mxu0
  %v431 = vadd.f32 0.0, %v430
  %432 = vmatmul.f32.gmra.mxu0 %v405
  %v433 = vpop.f32.mrf.mxu0
  %v434 = vadd.f32 0.0, %v433
  %435 = vmatmul.f32.gmra.mxu0 %v408
  %v436 = vpop.f32.mrf.mxu0
  %v437 = vadd.f32 0.0, %v436
  %438 = vmatmul.f32.gmra.mxu0 %v411
  %v439 = vpop.f32.mrf.mxu0
  %v440 = vadd.f32 0.0, %v439
  %441 = vdwg.mxu0
  %v443 = vsel %vm174, %v381, 0
  %v446 = vsel %vm174, %v382, 0
  %v449 = vsel %vm174, %v383, 0
  %v452 = vsel %vm174, %v384, 0
  %454 = vmatpush.msra.mxu0 0.0
  %455 = vmatpush.msra.mxu0 0.0
  %456 = vmatpush.msra.mxu0 0.0
  %457 = vmatpush.msra.mxu0 0.0
  %458 = vmatpush.msra.mxu0 0.0
  %459 = vmatpush.msra.mxu0 0.0
  %460 = vmatpush.msra.mxu0 0.0
  %461 = vmatpush.msra.mxu0 0.0
  %462 = vmatpush.msra.mxu0 %v392
  %463 = vmatpush.msra.mxu0 %v391
  %464 = vmatpush.msra.mxu0 %v390
  %465 = vmatpush.msra.mxu0 %v389
  %466 = vmatpush.msra.mxu0 %v388
  %467 = vmatpush.msra.mxu0 %v387
  %468 = vmatpush.msra.mxu0 %v386
  %469 = vmatpush.msra.mxu0 %v385
  %470 = vmatmul.f32.gmra.mxu0 %v443
  %v471 = vpop.f32.mrf.mxu0
  %v472 = vadd.f32 %v431, %v471
  %473 = vmatmul.f32.gmra.mxu0 %v446
  %v474 = vpop.f32.mrf.mxu0
  %v475 = vadd.f32 %v434, %v474
  %476 = vmatmul.f32.gmra.mxu0 %v449
  %v477 = vpop.f32.mrf.mxu0
  %v478 = vadd.f32 %v437, %v477
  %479 = vmatmul.f32.gmra.mxu0 %v452
  %v480 = vpop.f32.mrf.mxu0
  %v481 = vadd.f32 %v440, %v480
  %482 = vdwg.mxu0
  %v483 = vrot.slane %v360, 1
  %v484 = vrot.slane %v361, 1
  %v485 = vrot.slane %v362, 1
  %v486 = vrot.slane %v363, 1
  %vm487 = vcmp.lt.s32.totalorder %v57, 7
  %v488 = vsel %vm487, %v485, %v486
  %v489 = vsel %vm487, %v484, %v485
  %v490 = vsel %vm487, %v483, %v484
  %v491 = vsel %vm487, %v486, %v483
  %v492 = vsel %vm137, 1, 0
  %v493 = vsel %vm138, 1, 0
  %v494 = vsel %vm139, 1, 0
  %v495 = vsel %vm140, 1, 0
  %vm496 = vcmp.eq.s32.totalorder %v492, 1
  %vm497 = vcmp.eq.s32.totalorder %v493, 1
  %vm498 = vcmp.eq.s32.totalorder %v494, 1
  %vm499 = vcmp.eq.s32.totalorder %v495, 1
  %v500 = vsel %vm496, %v490, 0.0
  %v501 = vsel %vm497, %v489, 0.0
  %v502 = vsel %vm498, %v488, 0.0
  %v503 = vsel %vm499, %v491, 0.0
  %v504 = vld [vmem:[%s7 + $0x80] sm:$0xff]
  %v505 = vld [vmem:[%s7 + $0x88] sm:$0xff]
  %v506 = vld [vmem:[%s7 + $0x90] sm:$0xff]
  %v507 = vld [vmem:[%s7 + $0x98] sm:$0xff]
  %v508 = vld [vmem:[%s7 + $0xa0] sm:$0xff]
  %v509 = vld [vmem:[%s7 + $0xa8] sm:$0xff]
  %v510 = vld [vmem:[%s7 + $0xb0] sm:$0xff]
  %v511 = vld [vmem:[%s7 + $0xb8] sm:$0xff]
  %v513 = vsel %vm174, %v500, 0
  %v516 = vsel %vm174, %v501, 0
  %v519 = vsel %vm174, %v502, 0
  %v522 = vsel %vm174, %v503, 0
  %524 = vmatpush.msra.mxu0 0.0
  %525 = vmatpush.msra.mxu0 0.0
  %526 = vmatpush.msra.mxu0 0.0
  %527 = vmatpush.msra.mxu0 0.0
  %528 = vmatpush.msra.mxu0 0.0
  %529 = vmatpush.msra.mxu0 0.0
  %530 = vmatpush.msra.mxu0 0.0
  %531 = vmatpush.msra.mxu0 0.0
  %532 = vmatpush.msra.mxu0 %v511
  %533 = vmatpush.msra.mxu0 %v510
  %534 = vmatpush.msra.mxu0 %v509
  %535 = vmatpush.msra.mxu0 %v508
  %536 = vmatpush.msra.mxu0 %v507
  %537 = vmatpush.msra.mxu0 %v506
  %538 = vmatpush.msra.mxu0 %v505
  %539 = vmatpush.msra.mxu0 %v504
  %540 = vmatmul.f32.gmra.mxu0 %v513
  %v541 = vpop.f32.mrf.mxu0
  %v542 = vadd.f32 0.0, %v541
  %543 = vmatmul.f32.gmra.mxu0 %v516
  %v544 = vpop.f32.mrf.mxu0
  %v545 = vadd.f32 0.0, %v544
  %546 = vmatmul.f32.gmra.mxu0 %v519
  %v547 = vpop.f32.mrf.mxu0
  %v548 = vadd.f32 0.0, %v547
  %549 = vmatmul.f32.gmra.mxu0 %v522
  %v550 = vpop.f32.mrf.mxu0
  %v551 = vadd.f32 0.0, %v550
  %552 = vdwg.mxu0
  %v553 = vadd.f32 %v472, %v542
  %v554 = vadd.f32 %v475, %v545
  %v555 = vadd.f32 %v478, %v548
  %v556 = vadd.f32 %v481, %v551
  %v558 = vperm.slane %v173, 0
  %v560 = vadd.f32 %v553, %v558
  %v561 = vadd.f32 %v554, %v558
  %v562 = vadd.f32 %v555, %v558
  %v563 = vadd.f32 %v556, %v558
  %v564 = vld [vmem:[%s9] sm:$0x1]
  %v565 = vld [vmem:[%s10] sm:$0x1]
  %v566 = vld [vmem:[%s12] sm:$0x1]
  %v567 = vadd.f32 %v560, %v561
  %v568 = vadd.f32 %v567, %v562
  %v569 = vadd.f32 %v568, %v563
  %v570 = vrot.slane %v569, 4
  %v571 = vadd.f32 %v569, %v570
  %v572 = vrot.slane %v571, 2
  %v573 = vadd.f32 %v571, %v572
  %v574 = vrot.slane %v573, 1
  %v575 = vadd.f32 %v573, %v574
  %576 = vmatpush.msra.mxu0 %v165
  %577 = vmatpush.msra.mxu0 %v164
  %578 = vmatpush.msra.mxu0 %v163
  %579 = vmatpush.msra.mxu0 %v162
  %580 = vmatpush.msra.mxu0 %v161
  %581 = vmatpush.msra.mxu0 %v160
  %582 = vmatpush.msra.mxu0 %v159
  %583 = vmatpush.msra.mxu0 %v158
  %584 = vmatpush.msra.mxu0 %v157
  %585 = vmatpush.msra.mxu0 %v156
  %586 = vmatpush.msra.mxu0 %v155
  %587 = vmatpush.msra.mxu0 %v154
  %588 = vmatpush.msra.mxu0 %v153
  %589 = vmatpush.msra.mxu0 %v152
  %590 = vmatpush.msra.mxu0 %v151
  %591 = vmatpush.msra.mxu0 %v150
  %592 = vmatmul.f32.gmra.mxu0 %v575
  %v593 = vpop.f32.mrf.mxu0
  %v594 = vadd.f32 0.0, %v593
  %595 = vdwg.mxu0
  %v596 = vmul.f32 %v594, 0.001953125
  %vm597 = vcmask 64512
  %v599 = vsel %vm597, %v596, 0
  %601 = vmatpush.msra.mxu0 0.0
  %602 = vmatpush.msra.mxu0 0.0
  %603 = vmatpush.msra.mxu0 0.0
  %604 = vmatpush.msra.mxu0 0.0
  %605 = vmatpush.msra.mxu0 0.0
  %606 = vmatpush.msra.mxu0 0.0
  %607 = vmatpush.msra.mxu0 0.0
  %608 = vmatpush.msra.mxu0 0.0
  %609 = vmatpush.msra.mxu0 0.0
  %610 = vmatpush.msra.mxu0 0.0
  %611 = vmatpush.msra.mxu0 0.0
  %612 = vmatpush.msra.mxu0 0.0
  %613 = vmatpush.msra.mxu0 0.0
  %614 = vmatpush.msra.mxu0 0.0
  %615 = vmatpush.msra.mxu0 0.0
  %616 = vmatpush.msra.mxu0 %v166
  %617 = vmatmul.f32.gmra.mxu0 %v599
  %v618 = vpop.f32.mrf.mxu0
  %v619 = vadd.f32 0.0, %v618
  %620 = vdwg.mxu0
  %v621 = vperm.slane %v619, 0
  %v622 = vsub.f32 %v560, %v621
  %v623 = vsub.f32 %v561, %v621
  %v624 = vsub.f32 %v562, %v621
  %v625 = vsub.f32 %v563, %v621
  %v626 = vmul.f32 %v622, %v622
  %v627 = vmul.f32 %v623, %v623
  %v628 = vmul.f32 %v624, %v624
  %v629 = vmul.f32 %v625, %v625
  %v630 = vadd.f32 %v626, %v627
  %v631 = vadd.f32 %v630, %v628
  %v632 = vadd.f32 %v631, %v629
  %v633 = vrot.slane %v632, 4
  %v634 = vadd.f32 %v632, %v633
  %v635 = vrot.slane %v634, 2
  %v636 = vadd.f32 %v634, %v635
  %v637 = vrot.slane %v636, 1
  %v638 = vadd.f32 %v636, %v637
  %639 = vmatpush.msra.mxu0 %v165
  %640 = vmatpush.msra.mxu0 %v164
  %641 = vmatpush.msra.mxu0 %v163
  %642 = vmatpush.msra.mxu0 %v162
  %643 = vmatpush.msra.mxu0 %v161
  %644 = vmatpush.msra.mxu0 %v160
  %645 = vmatpush.msra.mxu0 %v159
  %646 = vmatpush.msra.mxu0 %v158
  %647 = vmatpush.msra.mxu0 %v157
  %648 = vmatpush.msra.mxu0 %v156
  %649 = vmatpush.msra.mxu0 %v155
  %650 = vmatpush.msra.mxu0 %v154
  %651 = vmatpush.msra.mxu0 %v153
  %652 = vmatpush.msra.mxu0 %v152
  %653 = vmatpush.msra.mxu0 %v151
  %654 = vmatpush.msra.mxu0 %v150
  %655 = vmatmul.f32.gmra.mxu0 %v638
  %v656 = vpop.f32.mrf.mxu0
  %v657 = vadd.f32 0.0, %v656
  %658 = vdwg.mxu0
  %v659 = vmul.f32 %v657, 0.001953125
  %v660 = vadd.f32 %v659, 1e-05
  %v661 = vrsqrt.pop %v660
  %v662 = vmul.f32 %v661, %v660
  %v663 = vmul.f32 %v662, %v661
  %v664 = vmul.f32 0.5, %v663
  %v665 = vsub.f32 1.5, %v664
  %v666 = vmul.f32 %v661, %v665
  %vm667 = vweird.f32 %v660
  %vm668 = vweird.f32 %v661
  %vm669 = vmor %vm667, %vm668
  %v670 = vsel %vm669, %v661, %v666
  %v671 = vmul.f32 %v564, %v670
  %v673 = vperm.slane %v565, 0
  %v675 = vsel %vm301, %v671, %v673
  %v677 = vsel %vm597, %v675, 0
  %679 = vmatpush.msra.mxu0 0.0
  %680 = vmatpush.msra.mxu0 0.0
  %681 = vmatpush.msra.mxu0 0.0
  %682 = vmatpush.msra.mxu0 0.0
  %683 = vmatpush.msra.mxu0 0.0
  %684 = vmatpush.msra.mxu0 0.0
  %685 = vmatpush.msra.mxu0 0.0
  %686 = vmatpush.msra.mxu0 0.0
  %687 = vmatpush.msra.mxu0 0.0
  %688 = vmatpush.msra.mxu0 0.0
  %689 = vmatpush.msra.mxu0 0.0
  %690 = vmatpush.msra.mxu0 0.0
  %691 = vmatpush.msra.mxu0 0.0
  %692 = vmatpush.msra.mxu0 0.0
  %693 = vmatpush.msra.mxu0 0.0
  %694 = vmatpush.msra.mxu0 %v166
  %695 = vmatmul.f32.gmra.mxu0 %v677
  %v696 = vpop.f32.mrf.mxu0
  %v697 = vadd.f32 0.0, %v696
  %698 = vdwg.mxu0
  %v699 = vperm.slane %v697, 0
  %v700 = vmul.f32 %v622, %v699
  %v701 = vmul.f32 %v623, %v699
  %v702 = vmul.f32 %v624, %v699
  %v703 = vmul.f32 %v625, %v699
  %v704 = vperm.slane %v697, 1
  %v705 = vadd.f32 %v700, %v704
  %v706 = vadd.f32 %v701, %v704
  %v707 = vadd.f32 %v702, %v704
  %v708 = vadd.f32 %v703, %v704
  %vm709 = vcmp.ge.f32.partialorder %v705, 0.0
  %vm710 = vcmp.ge.f32.partialorder %v706, 0.0
  %vm711 = vcmp.ge.f32.partialorder %v707, 0.0
  %vm712 = vcmp.ge.f32.partialorder %v708, 0.0
  %v713 = vmul.f32 %v705, 0.01
  %v714 = vmul.f32 %v706, 0.01
  %v715 = vmul.f32 %v707, 0.01
  %v716 = vmul.f32 %v708, 0.01
  %v717 = vsel %vm709, %v705, %v713
  %v718 = vsel %vm710, %v706, %v714
  %v719 = vsel %vm711, %v707, %v715
  %v720 = vsel %vm712, %v708, %v716
  %v721 = vrot.slane %v717, 7
  %v722 = vrot.slane %v718, 7
  %v723 = vrot.slane %v719, 7
  %v724 = vrot.slane %v720, 7
  %v725 = vsel %vm368, %v723, %v724
  %v726 = vsel %vm368, %v722, %v723
  %v727 = vsel %vm368, %v721, %v722
  %v728 = vsel %vm368, %v724, %v721
  %v729 = vsel %vm377, %v728, 0.0
  %v730 = vsel %vm378, %v727, 0.0
  %v731 = vsel %vm379, %v726, 0.0
  %v732 = vsel %vm380, %v725, 0.0
  %v733 = vld [vmem:[%s11] sm:$0xff]
  %v734 = vld [vmem:[%s11 + $0x8] sm:$0xff]
  %v735 = vld [vmem:[%s11 + $0x10] sm:$0xff]
  %v736 = vld [vmem:[%s11 + $0x18] sm:$0xff]
  %v737 = vld [vmem:[%s11 + $0x20] sm:$0xff]
  %v738 = vld [vmem:[%s11 + $0x28] sm:$0xff]
  %v739 = vld [vmem:[%s11 + $0x30] sm:$0xff]
  %v740 = vld [vmem:[%s11 + $0x38] sm:$0xff]
  %v741 = vld [vmem:[%s11 + $0x40] sm:$0xff]
  %v742 = vld [vmem:[%s11 + $0x48] sm:$0xff]
  %v743 = vld [vmem:[%s11 + $0x50] sm:$0xff]
  %v744 = vld [vmem:[%s11 + $0x58] sm:$0xff]
  %v745 = vld [vmem:[%s11 + $0x60] sm:$0xff]
  %v746 = vld [vmem:[%s11 + $0x68] sm:$0xff]
  %v747 = vld [vmem:[%s11 + $0x70] sm:$0xff]
  %v748 = vld [vmem:[%s11 + $0x78] sm:$0xff]
  %v749 = vld [vmem:[%s11 + $0x80] sm:$0xff]
  %v750 = vld [vmem:[%s11 + $0x88] sm:$0xff]
  %v751 = vld [vmem:[%s11 + $0x90] sm:$0xff]
  %v752 = vld [vmem:[%s11 + $0x98] sm:$0xff]
  %v753 = vld [vmem:[%s11 + $0xa0] sm:$0xff]
  %v754 = vld [vmem:[%s11 + $0xa8] sm:$0xff]
  %v755 = vld [vmem:[%s11 + $0xb0] sm:$0xff]
  %v756 = vld [vmem:[%s11 + $0xb8] sm:$0xff]
  %v757 = vld [vmem:[%s11 + $0xc0] sm:$0xff]
  %v758 = vld [vmem:[%s11 + $0xc8] sm:$0xff]
  %v759 = vld [vmem:[%s11 + $0xd0] sm:$0xff]
  %v760 = vld [vmem:[%s11 + $0xd8] sm:$0xff]
  %v761 = vld [vmem:[%s11 + $0xe0] sm:$0xff]
  %v762 = vld [vmem:[%s11 + $0xe8] sm:$0xff]
  %v763 = vld [vmem:[%s11 + $0xf0] sm:$0xff]
  %v764 = vld [vmem:[%s11 + $0xf8] sm:$0xff]
  %765 = vmatpush.msra.mxu0 %v764
  %766 = vmatpush.msra.mxu0 %v763
  %767 = vmatpush.msra.mxu0 %v762
  %768 = vmatpush.msra.mxu0 %v761
  %769 = vmatpush.msra.mxu0 %v760
  %770 = vmatpush.msra.mxu0 %v759
  %771 = vmatpush.msra.mxu0 %v758
  %772 = vmatpush.msra.mxu0 %v757
  %773 = vmatpush.msra.mxu0 %v756
  %774 = vmatpush.msra.mxu0 %v755
  %775 = vmatpush.msra.mxu0 %v754
  %776 = vmatpush.msra.mxu0 %v753
  %777 = vmatpush.msra.mxu0 %v752
  %778 = vmatpush.msra.mxu0 %v751
  %779 = vmatpush.msra.mxu0 %v750
  %780 = vmatpush.msra.mxu0 %v749
  %781 = vmatmul.f32.gmra.mxu0 %v717
  %v782 = vpop.f32.mrf.mxu0
  %v783 = vadd.f32 0.0, %v782
  %784 = vmatmul.f32.gmra.mxu0 %v718
  %v785 = vpop.f32.mrf.mxu0
  %v786 = vadd.f32 0.0, %v785
  %787 = vmatmul.f32.gmra.mxu0 %v719
  %v788 = vpop.f32.mrf.mxu0
  %v789 = vadd.f32 0.0, %v788
  %790 = vmatmul.f32.gmra.mxu0 %v720
  %v791 = vpop.f32.mrf.mxu0
  %v792 = vadd.f32 0.0, %v791
  %793 = vdwg.mxu0
  %794 = vmatpush.msra.mxu0 %v748
  %795 = vmatpush.msra.mxu0 %v747
  %796 = vmatpush.msra.mxu0 %v746
  %797 = vmatpush.msra.mxu0 %v745
  %798 = vmatpush.msra.mxu0 %v744
  %799 = vmatpush.msra.mxu0 %v743
  %800 = vmatpush.msra.mxu0 %v742
  %801 = vmatpush.msra.mxu0 %v741
  %802 = vmatpush.msra.mxu0 %v740
  %803 = vmatpush.msra.mxu0 %v739
  %804 = vmatpush.msra.mxu0 %v738
  %805 = vmatpush.msra.mxu0 %v737
  %806 = vmatpush.msra.mxu0 %v736
  %807 = vmatpush.msra.mxu0 %v735
  %808 = vmatpush.msra.mxu0 %v734
  %809 = vmatpush.msra.mxu0 %v733
  %810 = vmatmul.f32.gmra.mxu0 %v729
  %v811 = vpop.f32.mrf.mxu0
  %v812 = vadd.f32 %v783, %v811
  %813 = vmatmul.f32.gmra.mxu0 %v730
  %v814 = vpop.f32.mrf.mxu0
  %v815 = vadd.f32 %v786, %v814
  %816 = vmatmul.f32.gmra.mxu0 %v731
  %v817 = vpop.f32.mrf.mxu0
  %v818 = vadd.f32 %v789, %v817
  %819 = vmatmul.f32.gmra.mxu0 %v732
  %v820 = vpop.f32.mrf.mxu0
  %v821 = vadd.f32 %v792, %v820
  %822 = vdwg.mxu0
  %v823 = vrot.slane %v717, 1
  %v824 = vrot.slane %v718, 1
  %v825 = vrot.slane %v719, 1
  %v826 = vrot.slane %v720, 1
  %v827 = vsel %vm487, %v825, %v826
  %v828 = vsel %vm487, %v824, %v825
  %v829 = vsel %vm487, %v823, %v824
  %v830 = vsel %vm487, %v826, %v823
  %v831 = vsel %vm496, %v829, 0.0
  %v832 = vsel %vm497, %v828, 0.0
  %v833 = vsel %vm498, %v827, 0.0
  %v834 = vsel %vm499, %v830, 0.0
  %v835 = vld [vmem:[%s11 + $0x100] sm:$0xff]
  %v836 = vld [vmem:[%s11 + $0x108] sm:$0xff]
  %v837 = vld [vmem:[%s11 + $0x110] sm:$0xff]
  %v838 = vld [vmem:[%s11 + $0x118] sm:$0xff]
  %v839 = vld [vmem:[%s11 + $0x120] sm:$0xff]
  %v840 = vld [vmem:[%s11 + $0x128] sm:$0xff]
  %v841 = vld [vmem:[%s11 + $0x130] sm:$0xff]
  %v842 = vld [vmem:[%s11 + $0x138] sm:$0xff]
  %v843 = vld [vmem:[%s11 + $0x140] sm:$0xff]
  %v844 = vld [vmem:[%s11 + $0x148] sm:$0xff]
  %v845 = vld [vmem:[%s11 + $0x150] sm:$0xff]
  %v846 = vld [vmem:[%s11 + $0x158] sm:$0xff]
  %v847 = vld [vmem:[%s11 + $0x160] sm:$0xff]
  %v848 = vld [vmem:[%s11 + $0x168] sm:$0xff]
  %v849 = vld [vmem:[%s11 + $0x170] sm:$0xff]
  %v850 = vld [vmem:[%s11 + $0x178] sm:$0xff]
  %851 = vmatpush.msra.mxu0 %v850
  %852 = vmatpush.msra.mxu0 %v849
  %853 = vmatpush.msra.mxu0 %v848
  %854 = vmatpush.msra.mxu0 %v847
  %855 = vmatpush.msra.mxu0 %v846
  %856 = vmatpush.msra.mxu0 %v845
  %857 = vmatpush.msra.mxu0 %v844
  %858 = vmatpush.msra.mxu0 %v843
  %859 = vmatpush.msra.mxu0 %v842
  %860 = vmatpush.msra.mxu0 %v841
  %861 = vmatpush.msra.mxu0 %v840
  %862 = vmatpush.msra.mxu0 %v839
  %863 = vmatpush.msra.mxu0 %v838
  %864 = vmatpush.msra.mxu0 %v837
  %865 = vmatpush.msra.mxu0 %v836
  %866 = vmatpush.msra.mxu0 %v835
  %867 = vmatmul.f32.gmra.mxu0 %v831
  %v868 = vpop.f32.mrf.mxu0
  %v869 = vadd.f32 0.0, %v868
  %870 = vmatmul.f32.gmra.mxu0 %v832
  %v871 = vpop.f32.mrf.mxu0
  %v872 = vadd.f32 0.0, %v871
  %873 = vmatmul.f32.gmra.mxu0 %v833
  %v874 = vpop.f32.mrf.mxu0
  %v875 = vadd.f32 0.0, %v874
  %876 = vmatmul.f32.gmra.mxu0 %v834
  %v877 = vpop.f32.mrf.mxu0
  %v878 = vadd.f32 0.0, %v877
  %879 = vdwg.mxu0
  %v880 = vadd.f32 %v812, %v869
  %v881 = vadd.f32 %v815, %v872
  %v882 = vadd.f32 %v818, %v875
  %v883 = vadd.f32 %v821, %v878
  %v885 = vperm.slane %v566, 0
  %v887 = vadd.f32 %v880, %v885
  %v888 = vadd.f32 %v881, %v885
  %v889 = vadd.f32 %v882, %v885
  %v890 = vadd.f32 %v883, %v885
  %v891 = vadd.f32 %v887, %v560
  %v892 = vadd.f32 %v888, %v561
  %v893 = vadd.f32 %v889, %v562
  %v894 = vadd.f32 %v890, %v563
  %v895 = vld [vmem:[%s13] sm:$0x1]
  %v896 = vld [vmem:[%s14] sm:$0x1]
  %v897 = vld [vmem:[%s16] sm:$0x1]
  %v898 = vadd.f32 %v891, %v892
  %v899 = vadd.f32 %v898, %v893
  %v900 = vadd.f32 %v899, %v894
  %v901 = vrot.slane %v900, 4
  %v902 = vadd.f32 %v900, %v901
  %v903 = vrot.slane %v902, 2
  %v904 = vadd.f32 %v902, %v903
  %v905 = vrot.slane %v904, 1
  %v906 = vadd.f32 %v904, %v905
  %907 = vmatpush.msra.mxu0 %v165
  %908 = vmatpush.msra.mxu0 %v164
  %909 = vmatpush.msra.mxu0 %v163
  %910 = vmatpush.msra.mxu0 %v162
  %911 = vmatpush.msra.mxu0 %v161
  %912 = vmatpush.msra.mxu0 %v160
  %913 = vmatpush.msra.mxu0 %v159
  %914 = vmatpush.msra.mxu0 %v158
  %915 = vmatpush.msra.mxu0 %v157
  %916 = vmatpush.msra.mxu0 %v156
  %917 = vmatpush.msra.mxu0 %v155
  %918 = vmatpush.msra.mxu0 %v154
  %919 = vmatpush.msra.mxu0 %v153
  %920 = vmatpush.msra.mxu0 %v152
  %921 = vmatpush.msra.mxu0 %v151
  %922 = vmatpush.msra.mxu0 %v150
  %923 = vmatmul.f32.gmra.mxu0 %v906
  %v924 = vpop.f32.mrf.mxu0
  %v925 = vadd.f32 0.0, %v924
  %926 = vdwg.mxu0
  %v927 = vmul.f32 %v925, 0.001953125
  %v929 = vsel %vm597, %v927, 0
  %931 = vmatpush.msra.mxu0 0.0
  %932 = vmatpush.msra.mxu0 0.0
  %933 = vmatpush.msra.mxu0 0.0
  %934 = vmatpush.msra.mxu0 0.0
  %935 = vmatpush.msra.mxu0 0.0
  %936 = vmatpush.msra.mxu0 0.0
  %937 = vmatpush.msra.mxu0 0.0
  %938 = vmatpush.msra.mxu0 0.0
  %939 = vmatpush.msra.mxu0 0.0
  %940 = vmatpush.msra.mxu0 0.0
  %941 = vmatpush.msra.mxu0 0.0
  %942 = vmatpush.msra.mxu0 0.0
  %943 = vmatpush.msra.mxu0 0.0
  %944 = vmatpush.msra.mxu0 0.0
  %945 = vmatpush.msra.mxu0 0.0
  %946 = vmatpush.msra.mxu0 %v166
  %947 = vmatmul.f32.gmra.mxu0 %v929
  %v948 = vpop.f32.mrf.mxu0
  %v949 = vadd.f32 0.0, %v948
  %950 = vdwg.mxu0
  %v951 = vperm.slane %v949, 0
  %v952 = vsub.f32 %v891, %v951
  %v953 = vsub.f32 %v892, %v951
  %v954 = vsub.f32 %v893, %v951
  %v955 = vsub.f32 %v894, %v951
  %v956 = vmul.f32 %v952, %v952
  %v957 = vmul.f32 %v953, %v953
  %v958 = vmul.f32 %v954, %v954
  %v959 = vmul.f32 %v955, %v955
  %v960 = vadd.f32 %v956, %v957
  %v961 = vadd.f32 %v960, %v958
  %v962 = vadd.f32 %v961, %v959
  %v963 = vrot.slane %v962, 4
  %v964 = vadd.f32 %v962, %v963
  %v965 = vrot.slane %v964, 2
  %v966 = vadd.f32 %v964, %v965
  %v967 = vrot.slane %v966, 1
  %v968 = vadd.f32 %v966, %v967
  %969 = vmatpush.msra.mxu0 %v165
  %970 = vmatpush.msra.mxu0 %v164
  %971 = vmatpush.msra.mxu0 %v163
  %972 = vmatpush.msra.mxu0 %v162
  %973 = vmatpush.msra.mxu0 %v161
  %974 = vmatpush.msra.mxu0 %v160
  %975 = vmatpush.msra.mxu0 %v159
  %976 = vmatpush.msra.mxu0 %v158
  %977 = vmatpush.msra.mxu0 %v157
  %978 = vmatpush.msra.mxu0 %v156
  %979 = vmatpush.msra.mxu0 %v155
  %980 = vmatpush.msra.mxu0 %v154
  %981 = vmatpush.msra.mxu0 %v153
  %982 = vmatpush.msra.mxu0 %v152
  %983 = vmatpush.msra.mxu0 %v151
  %984 = vmatpush.msra.mxu0 %v150
  %985 = vmatmul.f32.gmra.mxu0 %v968
  %v986 = vpop.f32.mrf.mxu0
  %v987 = vadd.f32 0.0, %v986
  %988 = vdwg.mxu0
  %v989 = vmul.f32 %v987, 0.001953125
  %v990 = vadd.f32 %v989, 1e-05
  %v991 = vrsqrt.pop %v990
  %v992 = vmul.f32 %v991, %v990
  %v993 = vmul.f32 %v992, %v991
  %v994 = vmul.f32 0.5, %v993
  %v995 = vsub.f32 1.5, %v994
  %v996 = vmul.f32 %v991, %v995
  %vm997 = vweird.f32 %v990
  %vm998 = vweird.f32 %v991
  %vm999 = vmor %vm997, %vm998
  %v1000 = vsel %vm999, %v991, %v996
  %v1001 = vmul.f32 %v895, %v1000
  %v1003 = vperm.slane %v896, 0
  %v1005 = vsel %vm301, %v1001, %v1003
  %v1007 = vsel %vm597, %v1005, 0
  %1009 = vmatpush.msra.mxu0 0.0
  %1010 = vmatpush.msra.mxu0 0.0
  %1011 = vmatpush.msra.mxu0 0.0
  %1012 = vmatpush.msra.mxu0 0.0
  %1013 = vmatpush.msra.mxu0 0.0
  %1014 = vmatpush.msra.mxu0 0.0
  %1015 = vmatpush.msra.mxu0 0.0
  %1016 = vmatpush.msra.mxu0 0.0
  %1017 = vmatpush.msra.mxu0 0.0
  %1018 = vmatpush.msra.mxu0 0.0
  %1019 = vmatpush.msra.mxu0 0.0
  %1020 = vmatpush.msra.mxu0 0.0
  %1021 = vmatpush.msra.mxu0 0.0
  %1022 = vmatpush.msra.mxu0 0.0
  %1023 = vmatpush.msra.mxu0 0.0
  %1024 = vmatpush.msra.mxu0 %v166
  %1025 = vmatmul.f32.gmra.mxu0 %v1007
  %v1026 = vpop.f32.mrf.mxu0
  %v1027 = vadd.f32 0.0, %v1026
  %1028 = vdwg.mxu0
  %v1029 = vperm.slane %v1027, 0
  %v1030 = vmul.f32 %v952, %v1029
  %v1031 = vmul.f32 %v953, %v1029
  %v1032 = vmul.f32 %v954, %v1029
  %v1033 = vmul.f32 %v955, %v1029
  %v1034 = vperm.slane %v1027, 1
  %v1035 = vadd.f32 %v1030, %v1034
  %v1036 = vadd.f32 %v1031, %v1034
  %v1037 = vadd.f32 %v1032, %v1034
  %v1038 = vadd.f32 %v1033, %v1034
  %vm1039 = vcmp.ge.f32.partialorder %v1035, 0.0
  %vm1040 = vcmp.ge.f32.partialorder %v1036, 0.0
  %vm1041 = vcmp.ge.f32.partialorder %v1037, 0.0
  %vm1042 = vcmp.ge.f32.partialorder %v1038, 0.0
  %v1043 = vmul.f32 %v1035, 0.01
  %v1044 = vmul.f32 %v1036, 0.01
  %v1045 = vmul.f32 %v1037, 0.01
  %v1046 = vmul.f32 %v1038, 0.01
  %v1047 = vsel %vm1039, %v1035, %v1043
  %v1048 = vsel %vm1040, %v1036, %v1044
  %v1049 = vsel %vm1041, %v1037, %v1045
  %v1050 = vsel %vm1042, %v1038, %v1046
  %v1051 = vrot.slane %v1047, 7
  %v1052 = vrot.slane %v1048, 7
  %v1053 = vrot.slane %v1049, 7
  %v1054 = vrot.slane %v1050, 7
  %v1055 = vsel %vm368, %v1053, %v1054
  %v1056 = vsel %vm368, %v1052, %v1053
  %v1057 = vsel %vm368, %v1051, %v1052
  %v1058 = vsel %vm368, %v1054, %v1051
  %v1059 = vsel %vm377, %v1058, 0.0
  %v1060 = vsel %vm378, %v1057, 0.0
  %v1061 = vsel %vm379, %v1056, 0.0
  %v1062 = vsel %vm380, %v1055, 0.0
  %v1063 = vld [vmem:[%s15] sm:$0xff]
  %v1064 = vld [vmem:[%s15 + $0x8] sm:$0xff]
  %v1065 = vld [vmem:[%s15 + $0x10] sm:$0xff]
  %v1066 = vld [vmem:[%s15 + $0x18] sm:$0xff]
  %v1067 = vld [vmem:[%s15 + $0x20] sm:$0xff]
  %v1068 = vld [vmem:[%s15 + $0x28] sm:$0xff]
  %v1069 = vld [vmem:[%s15 + $0x30] sm:$0xff]
  %v1070 = vld [vmem:[%s15 + $0x38] sm:$0xff]
  %v1071 = vld [vmem:[%s15 + $0x40] sm:$0xff]
  %v1072 = vld [vmem:[%s15 + $0x48] sm:$0xff]
  %v1073 = vld [vmem:[%s15 + $0x50] sm:$0xff]
  %v1074 = vld [vmem:[%s15 + $0x58] sm:$0xff]
  %v1075 = vld [vmem:[%s15 + $0x60] sm:$0xff]
  %v1076 = vld [vmem:[%s15 + $0x68] sm:$0xff]
  %v1077 = vld [vmem:[%s15 + $0x70] sm:$0xff]
  %v1078 = vld [vmem:[%s15 + $0x78] sm:$0xff]
  %v1079 = vld [vmem:[%s15 + $0x80] sm:$0xff]
  %v1080 = vld [vmem:[%s15 + $0x88] sm:$0xff]
  %v1081 = vld [vmem:[%s15 + $0x90] sm:$0xff]
  %v1082 = vld [vmem:[%s15 + $0x98] sm:$0xff]
  %v1083 = vld [vmem:[%s15 + $0xa0] sm:$0xff]
  %v1084 = vld [vmem:[%s15 + $0xa8] sm:$0xff]
  %v1085 = vld [vmem:[%s15 + $0xb0] sm:$0xff]
  %v1086 = vld [vmem:[%s15 + $0xb8] sm:$0xff]
  %v1087 = vld [vmem:[%s15 + $0xc0] sm:$0xff]
  %v1088 = vld [vmem:[%s15 + $0xc8] sm:$0xff]
  %v1089 = vld [vmem:[%s15 + $0xd0] sm:$0xff]
  %v1090 = vld [vmem:[%s15 + $0xd8] sm:$0xff]
  %v1091 = vld [vmem:[%s15 + $0xe0] sm:$0xff]
  %v1092 = vld [vmem:[%s15 + $0xe8] sm:$0xff]
  %v1093 = vld [vmem:[%s15 + $0xf0] sm:$0xff]
  %v1094 = vld [vmem:[%s15 + $0xf8] sm:$0xff]
  %1095 = vmatpush.msra.mxu0 %v1094
  %1096 = vmatpush.msra.mxu0 %v1093
  %1097 = vmatpush.msra.mxu0 %v1092
  %1098 = vmatpush.msra.mxu0 %v1091
  %1099 = vmatpush.msra.mxu0 %v1090
  %1100 = vmatpush.msra.mxu0 %v1089
  %1101 = vmatpush.msra.mxu0 %v1088
  %1102 = vmatpush.msra.mxu0 %v1087
  %1103 = vmatpush.msra.mxu0 %v1086
  %1104 = vmatpush.msra.mxu0 %v1085
  %1105 = vmatpush.msra.mxu0 %v1084
  %1106 = vmatpush.msra.mxu0 %v1083
  %1107 = vmatpush.msra.mxu0 %v1082
  %1108 = vmatpush.msra.mxu0 %v1081
  %1109 = vmatpush.msra.mxu0 %v1080
  %1110 = vmatpush.msra.mxu0 %v1079
  %1111 = vmatmul.f32.gmra.mxu0 %v1047
  %v1112 = vpop.f32.mrf.mxu0
  %v1113 = vadd.f32 0.0, %v1112
  %1114 = vmatmul.f32.gmra.mxu0 %v1048
  %v1115 = vpop.f32.mrf.mxu0
  %v1116 = vadd.f32 0.0, %v1115
  %1117 = vmatmul.f32.gmra.mxu0 %v1049
  %v1118 = vpop.f32.mrf.mxu0
  %v1119 = vadd.f32 0.0, %v1118
  %1120 = vmatmul.f32.gmra.mxu0 %v1050
  %v1121 = vpop.f32.mrf.mxu0
  %v1122 = vadd.f32 0.0, %v1121
  %1123 = vdwg.mxu0
  %1124 = vmatpush.msra.mxu0 %v1078
  %1125 = vmatpush.msra.mxu0 %v1077
  %1126 = vmatpush.msra.mxu0 %v1076
  %1127 = vmatpush.msra.mxu0 %v1075
  %1128 = vmatpush.msra.mxu0 %v1074
  %1129 = vmatpush.msra.mxu0 %v1073
  %1130 = vmatpush.msra.mxu0 %v1072
  %1131 = vmatpush.msra.mxu0 %v1071
  %1132 = vmatpush.msra.mxu0 %v1070
  %1133 = vmatpush.msra.mxu0 %v1069
  %1134 = vmatpush.msra.mxu0 %v1068
  %1135 = vmatpush.msra.mxu0 %v1067
  %1136 = vmatpush.msra.mxu0 %v1066
  %1137 = vmatpush.msra.mxu0 %v1065
  %1138 = vmatpush.msra.mxu0 %v1064
  %1139 = vmatpush.msra.mxu0 %v1063
  %1140 = vmatmul.f32.gmra.mxu0 %v1059
  %v1141 = vpop.f32.mrf.mxu0
  %v1142 = vadd.f32 %v1113, %v1141
  %1143 = vmatmul.f32.gmra.mxu0 %v1060
  %v1144 = vpop.f32.mrf.mxu0
  %v1145 = vadd.f32 %v1116, %v1144
  %1146 = vmatmul.f32.gmra.mxu0 %v1061
  %v1147 = vpop.f32.mrf.mxu0
  %v1148 = vadd.f32 %v1119, %v1147
  %1149 = vmatmul.f32.gmra.mxu0 %v1062
  %v1150 = vpop.f32.mrf.mxu0
  %v1151 = vadd.f32 %v1122, %v1150
  %1152 = vdwg.mxu0
  %v1153 = vrot.slane %v1047, 1
  %v1154 = vrot.slane %v1048, 1
  %v1155 = vrot.slane %v1049, 1
  %v1156 = vrot.slane %v1050, 1
  %v1157 = vsel %vm487, %v1155, %v1156
  %v1158 = vsel %vm487, %v1154, %v1155
  %v1159 = vsel %vm487, %v1153, %v1154
  %v1160 = vsel %vm487, %v1156, %v1153
  %v1161 = vsel %vm496, %v1159, 0.0
  %v1162 = vsel %vm497, %v1158, 0.0
  %v1163 = vsel %vm498, %v1157, 0.0
  %v1164 = vsel %vm499, %v1160, 0.0
  %v1165 = vld [vmem:[%s15 + $0x100] sm:$0xff]
  %v1166 = vld [vmem:[%s15 + $0x108] sm:$0xff]
  %v1167 = vld [vmem:[%s15 + $0x110] sm:$0xff]
  %v1168 = vld [vmem:[%s15 + $0x118] sm:$0xff]
  %v1169 = vld [vmem:[%s15 + $0x120] sm:$0xff]
  %v1170 = vld [vmem:[%s15 + $0x128] sm:$0xff]
  %v1171 = vld [vmem:[%s15 + $0x130] sm:$0xff]
  %v1172 = vld [vmem:[%s15 + $0x138] sm:$0xff]
  %v1173 = vld [vmem:[%s15 + $0x140] sm:$0xff]
  %v1174 = vld [vmem:[%s15 + $0x148] sm:$0xff]
  %v1175 = vld [vmem:[%s15 + $0x150] sm:$0xff]
  %v1176 = vld [vmem:[%s15 + $0x158] sm:$0xff]
  %v1177 = vld [vmem:[%s15 + $0x160] sm:$0xff]
  %v1178 = vld [vmem:[%s15 + $0x168] sm:$0xff]
  %v1179 = vld [vmem:[%s15 + $0x170] sm:$0xff]
  %v1180 = vld [vmem:[%s15 + $0x178] sm:$0xff]
  %1181 = vmatpush.msra.mxu0 %v1180
  %1182 = vmatpush.msra.mxu0 %v1179
  %1183 = vmatpush.msra.mxu0 %v1178
  %1184 = vmatpush.msra.mxu0 %v1177
  %1185 = vmatpush.msra.mxu0 %v1176
  %1186 = vmatpush.msra.mxu0 %v1175
  %1187 = vmatpush.msra.mxu0 %v1174
  %1188 = vmatpush.msra.mxu0 %v1173
  %1189 = vmatpush.msra.mxu0 %v1172
  %1190 = vmatpush.msra.mxu0 %v1171
  %1191 = vmatpush.msra.mxu0 %v1170
  %1192 = vmatpush.msra.mxu0 %v1169
  %1193 = vmatpush.msra.mxu0 %v1168
  %1194 = vmatpush.msra.mxu0 %v1167
  %1195 = vmatpush.msra.mxu0 %v1166
  %1196 = vmatpush.msra.mxu0 %v1165
  %1197 = vmatmul.f32.gmra.mxu0 %v1161
  %v1198 = vpop.f32.mrf.mxu0
  %v1199 = vadd.f32 0.0, %v1198
  %1200 = vmatmul.f32.gmra.mxu0 %v1162
  %v1201 = vpop.f32.mrf.mxu0
  %v1202 = vadd.f32 0.0, %v1201
  %1203 = vmatmul.f32.gmra.mxu0 %v1163
  %v1204 = vpop.f32.mrf.mxu0
  %v1205 = vadd.f32 0.0, %v1204
  %1206 = vmatmul.f32.gmra.mxu0 %v1164
  %v1207 = vpop.f32.mrf.mxu0
  %v1208 = vadd.f32 0.0, %v1207
  %1209 = vdwg.mxu0
  %v1210 = vadd.f32 %v1142, %v1199
  %v1211 = vadd.f32 %v1145, %v1202
  %v1212 = vadd.f32 %v1148, %v1205
  %v1213 = vadd.f32 %v1151, %v1208
  %v1215 = vperm.slane %v897, 0
  %v1217 = vadd.f32 %v1210, %v1215
  %v1218 = vadd.f32 %v1211, %v1215
  %v1219 = vadd.f32 %v1212, %v1215
  %v1220 = vadd.f32 %v1213, %v1215
  %v1221 = vadd.f32 %v1217, %v891
  %v1222 = vadd.f32 %v1218, %v892
  %v1223 = vadd.f32 %v1219, %v893
  %v1224 = vadd.f32 %v1220, %v894
  %1225 = vrot.lane.b32.xlu0 %v1221, 120
  %v1226 = vpop.permute.xlu0 %1225
  %1227 = vrot.lane.b32.xlu0 %v1222, 120
  %v1228 = vpop.permute.xlu0 %1227
  %1229 = vrot.lane.b32.xlu0 %v1223, 120
  %v1230 = vpop.permute.xlu0 %1229
  %1231 = vrot.lane.b32.xlu0 %v1224, 120
  %v1232 = vpop.permute.xlu0 %1231
  %v1233 = vmax.f32 %v1221, %v1226
  %v1234 = vmax.f32 %v1222, %v1228
  %v1235 = vmax.f32 %v1223, %v1230
  %v1236 = vmax.f32 %v1224, %v1232
  %v1241 = vrot.slane %v1233, 2
  %v1242 = vrot.slane %v1233, 4
  %v1243 = vrot.slane %v1233, 6
  %v1244 = vrot.slane %v1234, 2
  %v1245 = vrot.slane %v1234, 4
  %v1246 = vrot.slane %v1234, 6
  %v1247 = vrot.slane %v1235, 2
  %v1248 = vrot.slane %v1235, 4
  %v1249 = vrot.slane %v1235, 6
  %v1250 = vrot.slane %v1236, 2
  %v1251 = vrot.slane %v1236, 4
  %v1252 = vrot.slane %v1236, 6
  %vm1265 = vcmask 1041408
  %v1266 = vsel %vm1265, %v1233, -inf
  %v1267 = vrot.slane %v1266, 4
  %v1268 = vmax.f32 %v1266, %v1267
  %v1269 = vrot.slane %v1268, 2
  %v1270 = vmax.f32 %v1268, %v1269
  %v1271 = vrot.slane %v1270, 1
  %v1272 = vmax.f32 %v1270, %v1271
  %v1273 = vsel %vm1265, %v1241, -inf
  %v1274 = vrot.slane %v1273, 4
  %v1275 = vmax.f32 %v1273, %v1274
  %v1276 = vrot.slane %v1275, 2
  %v1277 = vmax.f32 %v1275, %v1276
  %v1278 = vrot.slane %v1277, 1
  %v1279 = vmax.f32 %v1277, %v1278
  %v1280 = vsel %vm1265, %v1242, -inf
  %v1281 = vrot.slane %v1280, 4
  %v1282 = vmax.f32 %v1280, %v1281
  %v1283 = vrot.slane %v1282, 2
  %v1284 = vmax.f32 %v1282, %v1283
  %v1285 = vrot.slane %v1284, 1
  %v1286 = vmax.f32 %v1284, %v1285
  %v1287 = vsel %vm1265, %v1243, -inf
  %v1288 = vrot.slane %v1287, 4
  %v1289 = vmax.f32 %v1287, %v1288
  %v1290 = vrot.slane %v1289, 2
  %v1291 = vmax.f32 %v1289, %v1290
  %v1292 = vrot.slane %v1291, 1
  %v1293 = vmax.f32 %v1291, %v1292
  %v1294 = vsel %vm1265, %v1234, -inf
  %v1295 = vrot.slane %v1294, 4
  %v1296 = vmax.f32 %v1294, %v1295
  %v1297 = vrot.slane %v1296, 2
  %v1298 = vmax.f32 %v1296, %v1297
  %v1299 = vrot.slane %v1298, 1
  %v1300 = vmax.f32 %v1298, %v1299
  %v1301 = vsel %vm1265, %v1244, -inf
  %v1302 = vrot.slane %v1301, 4
  %v1303 = vmax.f32 %v1301, %v1302
  %v1304 = vrot.slane %v1303, 2
  %v1305 = vmax.f32 %v1303, %v1304
  %v1306 = vrot.slane %v1305, 1
  %v1307 = vmax.f32 %v1305, %v1306
  %v1308 = vsel %vm1265, %v1245, -inf
  %v1309 = vrot.slane %v1308, 4
  %v1310 = vmax.f32 %v1308, %v1309
  %v1311 = vrot.slane %v1310, 2
  %v1312 = vmax.f32 %v1310, %v1311
  %v1313 = vrot.slane %v1312, 1
  %v1314 = vmax.f32 %v1312, %v1313
  %v1315 = vsel %vm1265, %v1246, -inf
  %v1316 = vrot.slane %v1315, 4
  %v1317 = vmax.f32 %v1315, %v1316
  %v1318 = vrot.slane %v1317, 2
  %v1319 = vmax.f32 %v1317, %v1318
  %v1320 = vrot.slane %v1319, 1
  %v1321 = vmax.f32 %v1319, %v1320
  %v1322 = vsel %vm1265, %v1235, -inf
  %v1323 = vrot.slane %v1322, 4
  %v1324 = vmax.f32 %v1322, %v1323
  %v1325 = vrot.slane %v1324, 2
  %v1326 = vmax.f32 %v1324, %v1325
  %v1327 = vrot.slane %v1326, 1
  %v1328 = vmax.f32 %v1326, %v1327
  %v1329 = vsel %vm1265, %v1247, -inf
  %v1330 = vrot.slane %v1329, 4
  %v1331 = vmax.f32 %v1329, %v1330
  %v1332 = vrot.slane %v1331, 2
  %v1333 = vmax.f32 %v1331, %v1332
  %v1334 = vrot.slane %v1333, 1
  %v1335 = vmax.f32 %v1333, %v1334
  %v1336 = vsel %vm1265, %v1248, -inf
  %v1337 = vrot.slane %v1336, 4
  %v1338 = vmax.f32 %v1336, %v1337
  %v1339 = vrot.slane %v1338, 2
  %v1340 = vmax.f32 %v1338, %v1339
  %v1341 = vrot.slane %v1340, 1
  %v1342 = vmax.f32 %v1340, %v1341
  %v1343 = vsel %vm1265, %v1249, -inf
  %v1344 = vrot.slane %v1343, 4
  %v1345 = vmax.f32 %v1343, %v1344
  %v1346 = vrot.slane %v1345, 2
  %v1347 = vmax.f32 %v1345, %v1346
  %v1348 = vrot.slane %v1347, 1
  %v1349 = vmax.f32 %v1347, %v1348
  %v1350 = vsel %vm1265, %v1236, -inf
  %v1351 = vrot.slane %v1350, 4
  %v1352 = vmax.f32 %v1350, %v1351
  %v1353 = vrot.slane %v1352, 2
  %v1354 = vmax.f32 %v1352, %v1353
  %v1355 = vrot.slane %v1354, 1
  %v1356 = vmax.f32 %v1354, %v1355
  %v1357 = vsel %vm1265, %v1250, -inf
  %v1358 = vrot.slane %v1357, 4
  %v1359 = vmax.f32 %v1357, %v1358
  %v1360 = vrot.slane %v1359, 2
  %v1361 = vmax.f32 %v1359, %v1360
  %v1362 = vrot.slane %v1361, 1
  %v1363 = vmax.f32 %v1361, %v1362
  %v1364 = vsel %vm1265, %v1251, -inf
  %v1365 = vrot.slane %v1364, 4
  %v1366 = vmax.f32 %v1364, %v1365
  %v1367 = vrot.slane %v1366, 2
  %v1368 = vmax.f32 %v1366, %v1367
  %v1369 = vrot.slane %v1368, 1
  %v1370 = vmax.f32 %v1368, %v1369
  %v1371 = vsel %vm1265, %v1252, -inf
  %v1372 = vrot.slane %v1371, 4
  %v1373 = vmax.f32 %v1371, %v1372
  %v1374 = vrot.slane %v1373, 2
  %v1375 = vmax.f32 %v1373, %v1374
  %v1376 = vrot.slane %v1375, 1
  %v1377 = vmax.f32 %v1375, %v1376
  %vm1394 = vcmask 1041409
  %v1395 = vsel %vm1394, %v1279, %v1272
  %vm1396 = vcmask 1042434
  %v1397 = vsel %vm1396, %v1286, %v1395
  %vm1398 = vcmask 1043459
  %v1399 = vsel %vm1398, %v1293, %v1397
  %vm1400 = vcmask 1044484
  %v1401 = vsel %vm1400, %v1300, %v1399
  %vm1402 = vcmask 1045509
  %v1403 = vsel %vm1402, %v1307, %v1401
  %vm1404 = vcmask 1046534
  %v1405 = vsel %vm1404, %v1314, %v1403
  %vm1406 = vcmask 1047559
  %v1407 = vsel %vm1406, %v1321, %v1405
  %v1408 = vsel %vm1394, %v1335, %v1328
  %v1409 = vsel %vm1396, %v1342, %v1408
  %v1410 = vsel %vm1398, %v1349, %v1409
  %v1411 = vsel %vm1400, %v1356, %v1410
  %v1412 = vsel %vm1402, %v1363, %v1411
  %v1413 = vsel %vm1404, %v1370, %v1412
  %v1414 = vsel %vm1406, %v1377, %v1413
  %1417 = vst [vmem:[%s17] sm:$0xff] %v1407
  %1418 = vst [vmem:[%s17 + $0x8] sm:$0xff] %v1414
  // Predicated region
  $region70: #{down_layer_forward.1} parent=0 // pred_check
    _
  $region71: #{down_layer_forward.1} parent=0 // pred_check_branch
    %1420 = sbr.rel (0) target = $region73
  $region72: #{down_layer_forward.1} parent=0 // pred_region
    _
  $region73: #{down_layer_forward.1} parent=0 // pred_fallthru
    _
  // Predicated region
  $region74: #{down_layer_forward.1} parent=0 // pred_check
    _
  $region75: #{down_layer_forward.1} parent=0 // pred_check_branch
    %1422 = sbr.rel (0) target = $region77
  $region76: #{down_layer_forward.1} parent=0 // pred_region
    _
  $region77: #{down_layer_forward.1} parent=0 // pred_fallthru
    _

</llo_original>
